<compile_context>
chip_gen: v5e
topology: v5e:2x2
jax: 0.10.0
libtpu: 0.0.40
codegen_flags: <defaults>
</compile_context>

<pallas_src>
import functools
import math

import jax
import jax.numpy as jnp
from jax import lax
from jax.experimental import pallas as pl
from jax.experimental.pallas import tpu as pltpu


def _round_up(a: int, m: int) -> int:
    return (a + m - 1) // m * m


def _mlp_kwta_kernel(x_ref, w_ref, o_ref, *, k, n):
    # y = x @ W^T on the MXU, f32 accumulation.  w_ref is (fc2, fc1); contract
    # along its last dim so no host-side transpose is needed.
    y = lax.dot_general(
        x_ref[...], w_ref[...],
        dimension_numbers=(((1,), (1,)), ((), ())),
        preferred_element_type=jnp.float32,
    )                                                       # (TB, N)
    tb = y.shape[0]

    # Rotation-based rank counting, one rotation per *pair distance*:
    #   beats[i] = 1  iff  the element at lane distance s beats element i
    #                      (strictly greater, or equal with lower index).
    # Forward:   rank[i]            += beats[i]
    # Backward:  rank[partner of i] += 1 - beats[i]
    #            realized as  rank += roll(1, n-s) - roll(beats, n-s)
    #            with the constant folded into the final threshold.
    idx = lax.broadcasted_iota(jnp.int32, (tb, n), 1)        # lane index i
    rank_fwd = jnp.zeros((tb, n), jnp.int32)
    rank_rev = jnp.zeros((tb, n), jnp.int32)
    n_rev = 0
    for s in range(1, n // 2 + 1):                           # static shifts
        y_s = pltpu.roll(y, s, axis=1)                       # XLU lane rotate
        j_s = pltpu.roll(idx, s, axis=1)                     # original col idx
        beats = ((y_s > y) | ((y_s == y) & (j_s < idx))).astype(jnp.int32)
        rank_fwd = rank_fwd + beats
        if s != n - s:                                       # not the half-way
            rank_rev = rank_rev + pltpu.roll(beats, n - s, axis=1)
            n_rev += 1
        # (for even n the s == n/2 rotation already covers both directions)

    # rank = rank_fwd + (n_rev - rank_rev);  winners: rank < k.
    o_ref[...] = ((rank_fwd - rank_rev) < (k - n_rev)).astype(o_ref.dtype)


def mlp_kwta_forward(x, weight, sparsity, *, block_b=32):
    """x: (B, ...) flattened to (B, fc1); weight: (fc2, fc1) like nn.Linear.weight."""
    b = x.shape[0]
    x2d = x.reshape(b, -1).astype(jnp.float32)               # flatten(start_dim=1)
    fc1 = x2d.shape[1]
    fc2, fc1_w = weight.shape
    assert fc1_w == fc1, "weight shape must be (fc2, fc1)"
    w = weight.astype(jnp.float32)                           # no transpose
    # Matches the PyTorch module: k = ceil(sparsity * embedding_dim).
    k = int(math.ceil(sparsity * fc2))

    # Batch tile: multiple of 8 (f32 sublane); pad B up so every tile is full.
    block_b = max(1, min(int(block_b), b))
    block_b = _round_up(block_b, 8)
    b_pad = _round_up(b, block_b)
    if b_pad != b:
        x2d = jnp.pad(x2d, ((0, b_pad - b), (0, 0)))
    grid = (b_pad // block_b,)

    cost = pl.CostEstimate(
        flops=2 * b_pad * fc1 * fc2 + 3 * b_pad * fc2 * fc2,
        transcendentals=0,
        bytes_accessed=4 * (b_pad * fc1 + fc2 * fc1 + b_pad * fc2),
    )

    kernel = functools.partial(_mlp_kwta_kernel, k=k, n=fc2)
    out = pl.pallas_call(
        kernel,
        out_shape=jax.ShapeDtypeStruct((b_pad, fc2), jnp.float32),
        grid=grid,
        in_specs=[
            pl.BlockSpec((block_b, fc1), lambda i: (i, 0)),   # x tile
            pl.BlockSpec((fc2, fc1), lambda i: (0, 0)),       # full weight, resident
        ],
        out_specs=pl.BlockSpec((block_b, fc2), lambda i: (i, 0)),
        compiler_params=pltpu.CompilerParams(
            dimension_semantics=("parallel",)),               # batch axis -> both TCs on v7x
        cost_estimate=cost,
    )(x2d, w)
    return out[:b] if b_pad != b else out


def _reference(x, weight, sparsity):
    b = x.shape[0]
    x2d = x.reshape(b, -1).astype(jnp.float32)
    y = x2d @ weight.T.astype(jnp.float32)
    n = y.shape[1]
    k = int(math.ceil(sparsity * n))
    # stable descending top-k mask
    order = jnp.argsort(-y, axis=1, stable=True)
    ranks = jnp.argsort(order, axis=1, stable=True)
    return (ranks < k).astype(jnp.float32)


if __name__ == "__main__":
    key = jax.random.PRNGKey(0)
    kx, kw = jax.random.split(key)

    # Small shapes consistent with the module: input flattens to fc1 features.
    # fc1 = 128 keeps the LHS lane dimension dense; block_b=8 gives 4 grid
    # steps so the DMA/compute pipeline is actually exercised.
    B, C, H, W = 32, 2, 8, 8          # fc1 = 128
    fc1 = C * H * W
    fc2 = 128
    sparsity = 0.25                   # k = 32 winners per row

    x = jax.random.normal(kx, (B, C, H, W), dtype=jnp.float32)
    # Deterministic nn.Linear-style init (uniform in +-1/sqrt(fc1)), no bias.
    bound = 1.0 / math.sqrt(fc1)
    weight = jax.random.uniform(kw, (fc2, fc1), dtype=jnp.float32,
                                minval=-bound, maxval=bound)

    out = mlp_kwta_forward(x, weight, sparsity, block_b=8)
    out = jax.block_until_ready(out)

    ref = _reference(x, weight, sparsity)
    k = int(math.ceil(sparsity * fc2))
    assert out.shape == (B, fc2)
    assert jnp.array_equal(out, ref), "kernel output mismatch vs reference"
    # each row must have exactly k winners
    assert bool(jnp.all(jnp.sum(out, axis=1) == k))

    print("KERNEL_OK")
</pallas_src>

<mosaic_0001>
module attributes {stable_mosaic.version = 11 : i64} {
  func.func @_mlp_kwta_kernel(%arg0: i32, %arg1: memref<8x128xf32, #tpu.memory_space<vmem>>, %arg2: memref<128x128xf32, #tpu.memory_space<vmem>>, %arg3: memref<8x128xf32, #tpu.memory_space<vmem>>) attributes {dimension_semantics = [#tpu.dimension_semantics<parallel>], iteration_bounds = array<i64: 4>, scalar_prefetch = 0 : i64, scratch_operands = 0 : i64, tpu.core_type = #tpu.core_type<tc>, window_params = [{transform_indices = @transform_0, window_bounds = array<i64: 8, 128>}, {pipeline_mode = #tpu.pipeline_mode<synchronous>, transform_indices = @transform_1, window_bounds = array<i64: 128, 128>}, {transform_indices = @transform_2, window_bounds = array<i64: 8, 128>}]} {
    %c0 = arith.constant 0 : index
    %c0_0 = arith.constant 0 : index
    %0 = vector.load %arg1[%c0, %c0_0] : memref<8x128xf32, #tpu.memory_space<vmem>>, vector<8x128xf32>
    %c0_1 = arith.constant 0 : index
    %c0_2 = arith.constant 0 : index
    %1 = vector.load %arg2[%c0_1, %c0_2] : memref<128x128xf32, #tpu.memory_space<vmem>>, vector<128x128xf32>
    %cst = arith.constant dense<0.000000e+00> : vector<8x128xf32>
    %2 = tpu.matmul %0, %1, %cst {dimension_numbers = #tpu.dot_dimension_numbers<[1], [1], [0], [0], [0, 0, 1, 0], [], []>} : vector<8x128xf32>, vector<128x128xf32>, vector<8x128xf32> -> vector<8x128xf32>
    %3 = tpu.iota {dimensions = array<i32: 1>} : vector<8x128xi32>
    %c0_i32 = arith.constant 0 : i32
    %4 = vector.broadcast %c0_i32 : i32 to vector<8x128xi32>
    %c0_i32_3 = arith.constant 0 : i32
    %5 = vector.broadcast %c0_i32_3 : i32 to vector<8x128xi32>
    %c1_i32 = arith.constant 1 : i32
    %6 = tpu.dynamic_rotate %2 by %c1_i32 dim 1 : vector<8x128xf32>, i32 -> vector<8x128xf32>
    %c1_i32_4 = arith.constant 1 : i32
    %7 = tpu.dynamic_rotate %3 by %c1_i32_4 dim 1 : vector<8x128xi32>, i32 -> vector<8x128xi32>
    %8 = arith.cmpf ogt, %6, %2 : vector<8x128xf32>
    %9 = arith.cmpf oeq, %6, %2 : vector<8x128xf32>
    %10 = arith.cmpi slt, %7, %3 : vector<8x128xi32>
    %11 = arith.andi %9, %10 : vector<8x128xi1>
    %12 = arith.ori %8, %11 : vector<8x128xi1>
    %13 = arith.extui %12 : vector<8x128xi1> to vector<8x128xi32>
    %14 = arith.addi %4, %13 : vector<8x128xi32>
    %c127_i32 = arith.constant 127 : i32
    %15 = tpu.dynamic_rotate %13 by %c127_i32 dim 1 : vector<8x128xi32>, i32 -> vector<8x128xi32>
    %16 = arith.addi %5, %15 : vector<8x128xi32>
    %c2_i32 = arith.constant 2 : i32
    %17 = tpu.dynamic_rotate %2 by %c2_i32 dim 1 : vector<8x128xf32>, i32 -> vector<8x128xf32>
    %c2_i32_5 = arith.constant 2 : i32
    %18 = tpu.dynamic_rotate %3 by %c2_i32_5 dim 1 : vector<8x128xi32>, i32 -> vector<8x128xi32>
    %19 = arith.cmpf ogt, %17, %2 : vector<8x128xf32>
    %20 = arith.cmpf oeq, %17, %2 : vector<8x128xf32>
    %21 = arith.cmpi slt, %18, %3 : vector<8x128xi32>
    %22 = arith.andi %20, %21 : vector<8x128xi1>
    %23 = arith.ori %19, %22 : vector<8x128xi1>
    %24 = arith.extui %23 : vector<8x128xi1> to vector<8x128xi32>
    %25 = arith.addi %14, %24 : vector<8x128xi32>
    %c126_i32 = arith.constant 126 : i32
    %26 = tpu.dynamic_rotate %24 by %c126_i32 dim 1 : vector<8x128xi32>, i32 -> vector<8x128xi32>
    %27 = arith.addi %16, %26 : vector<8x128xi32>
    %c3_i32 = arith.constant 3 : i32
    %28 = tpu.dynamic_rotate %2 by %c3_i32 dim 1 : vector<8x128xf32>, i32 -> vector<8x128xf32>
    %c3_i32_6 = arith.constant 3 : i32
    %29 = tpu.dynamic_rotate %3 by %c3_i32_6 dim 1 : vector<8x128xi32>, i32 -> vector<8x128xi32>
    %30 = arith.cmpf ogt, %28, %2 : vector<8x128xf32>
    %31 = arith.cmpf oeq, %28, %2 : vector<8x128xf32>
    %32 = arith.cmpi slt, %29, %3 : vector<8x128xi32>
    %33 = arith.andi %31, %32 : vector<8x128xi1>
    %34 = arith.ori %30, %33 : vector<8x128xi1>
    %35 = arith.extui %34 : vector<8x128xi1> to vector<8x128xi32>
    %36 = arith.addi %25, %35 : vector<8x128xi32>
    %c125_i32 = arith.constant 125 : i32
    %37 = tpu.dynamic_rotate %35 by %c125_i32 dim 1 : vector<8x128xi32>, i32 -> vector<8x128xi32>
    %38 = arith.addi %27, %37 : vector<8x128xi32>
    %c4_i32 = arith.constant 4 : i32
    %39 = tpu.dynamic_rotate %2 by %c4_i32 dim 1 : vector<8x128xf32>, i32 -> vector<8x128xf32>
    %c4_i32_7 = arith.constant 4 : i32
    %40 = tpu.dynamic_rotate %3 by %c4_i32_7 dim 1 : vector<8x128xi32>, i32 -> vector<8x128xi32>
    %41 = arith.cmpf ogt, %39, %2 : vector<8x128xf32>
    %42 = arith.cmpf oeq, %39, %2 : vector<8x128xf32>
    %43 = arith.cmpi slt, %40, %3 : vector<8x128xi32>
    %44 = arith.andi %42, %43 : vector<8x128xi1>
    %45 = arith.ori %41, %44 : vector<8x128xi1>
    %46 = arith.extui %45 : vector<8x128xi1> to vector<8x128xi32>
    %47 = arith.addi %36, %46 : vector<8x128xi32>
    %c124_i32 = arith.constant 124 : i32
    %48 = tpu.dynamic_rotate %46 by %c124_i32 dim 1 : vector<8x128xi32>, i32 -> vector<8x128xi32>
    %49 = arith.addi %38, %48 : vector<8x128xi32>
    %c5_i32 = arith.constant 5 : i32
    %50 = tpu.dynamic_rotate %2 by %c5_i32 dim 1 : vector<8x128xf32>, i32 -> vector<8x128xf32>
    %c5_i32_8 = arith.constant 5 : i32
    %51 = tpu.dynamic_rotate %3 by %c5_i32_8 dim 1 : vector<8x128xi32>, i32 -> vector<8x128xi32>
    %52 = arith.cmpf ogt, %50, %2 : vector<8x128xf32>
    %53 = arith.cmpf oeq, %50, %2 : vector<8x128xf32>
    %54 = arith.cmpi slt, %51, %3 : vector<8x128xi32>
    %55 = arith.andi %53, %54 : vector<8x128xi1>
    %56 = arith.ori %52, %55 : vector<8x128xi1>
    %57 = arith.extui %56 : vector<8x128xi1> to vector<8x128xi32>
    %58 = arith.addi %47, %57 : vector<8x128xi32>
    %c123_i32 = arith.constant 123 : i32
    %59 = tpu.dynamic_rotate %57 by %c123_i32 dim 1 : vector<8x128xi32>, i32 -> vector<8x128xi32>
    %60 = arith.addi %49, %59 : vector<8x128xi32>
    %c6_i32 = arith.constant 6 : i32
    %61 = tpu.dynamic_rotate %2 by %c6_i32 dim 1 : vector<8x128xf32>, i32 -> vector<8x128xf32>
    %c6_i32_9 = arith.constant 6 : i32
    %62 = tpu.dynamic_rotate %3 by %c6_i32_9 dim 1 : vector<8x128xi32>, i32 -> vector<8x128xi32>
    %63 = arith.cmpf ogt, %61, %2 : vector<8x128xf32>
    %64 = arith.cmpf oeq, %61, %2 : vector<8x128xf32>
    %65 = arith.cmpi slt, %62, %3 : vector<8x128xi32>
    %66 = arith.andi %64, %65 : vector<8x128xi1>
    %67 = arith.ori %63, %66 : vector<8x128xi1>
    %68 = arith.extui %67 : vector<8x128xi1> to vector<8x128xi32>
    %69 = arith.addi %58, %68 : vector<8x128xi32>
    %c122_i32 = arith.constant 122 : i32
    %70 = tpu.dynamic_rotate %68 by %c122_i32 dim 1 : vector<8x128xi32>, i32 -> vector<8x128xi32>
    %71 = arith.addi %60, %70 : vector<8x128xi32>
    %c7_i32 = arith.constant 7 : i32
    %72 = tpu.dynamic_rotate %2 by %c7_i32 dim 1 : vector<8x128xf32>, i32 -> vector<8x128xf32>
    %c7_i32_10 = arith.constant 7 : i32
    %73 = tpu.dynamic_rotate %3 by %c7_i32_10 dim 1 : vector<8x128xi32>, i32 -> vector<8x128xi32>
    %74 = arith.cmpf ogt, %72, %2 : vector<8x128xf32>
    %75 = arith.cmpf oeq, %72, %2 : vector<8x128xf32>
    %76 = arith.cmpi slt, %73, %3 : vector<8x128xi32>
    %77 = arith.andi %75, %76 : vector<8x128xi1>
    %78 = arith.ori %74, %77 : vector<8x128xi1>
    %79 = arith.extui %78 : vector<8x128xi1> to vector<8x128xi32>
    %80 = arith.addi %69, %79 : vector<8x128xi32>
    %c121_i32 = arith.constant 121 : i32
    %81 = tpu.dynamic_rotate %79 by %c121_i32 dim 1 : vector<8x128xi32>, i32 -> vector<8x128xi32>
    %82 = arith.addi %71, %81 : vector<8x128xi32>
    %c8_i32 = arith.constant 8 : i32
    %83 = tpu.dynamic_rotate %2 by %c8_i32 dim 1 : vector<8x128xf32>, i32 -> vector<8x128xf32>
    %c8_i32_11 = arith.constant 8 : i32
    %84 = tpu.dynamic_rotate %3 by %c8_i32_11 dim 1 : vector<8x128xi32>, i32 -> vector<8x128xi32>
    %85 = arith.cmpf ogt, %83, %2 : vector<8x128xf32>
    %86 = arith.cmpf oeq, %83, %2 : vector<8x128xf32>
    %87 = arith.cmpi slt, %84, %3 : vector<8x128xi32>
    %88 = arith.andi %86, %87 : vector<8x128xi1>
    %89 = arith.ori %85, %88 : vector<8x128xi1>
    %90 = arith.extui %89 : vector<8x128xi1> to vector<8x128xi32>
    %91 = arith.addi %80, %90 : vector<8x128xi32>
    %c120_i32 = arith.constant 120 : i32
    %92 = tpu.dynamic_rotate %90 by %c120_i32 dim 1 : vector<8x128xi32>, i32 -> vector<8x128xi32>
    %93 = arith.addi %82, %92 : vector<8x128xi32>
    %c9_i32 = arith.constant 9 : i32
    %94 = tpu.dynamic_rotate %2 by %c9_i32 dim 1 : vector<8x128xf32>, i32 -> vector<8x128xf32>
    %c9_i32_12 = arith.constant 9 : i32
    %95 = tpu.dynamic_rotate %3 by %c9_i32_12 dim 1 : vector<8x128xi32>, i32 -> vector<8x128xi32>
    %96 = arith.cmpf ogt, %94, %2 : vector<8x128xf32>
    %97 = arith.cmpf oeq, %94, %2 : vector<8x128xf32>
    %98 = arith.cmpi slt, %95, %3 : vector<8x128xi32>
    %99 = arith.andi %97, %98 : vector<8x128xi1>
    %100 = arith.ori %96, %99 : vector<8x128xi1>
    %101 = arith.extui %100 : vector<8x128xi1> to vector<8x128xi32>
    %102 = arith.addi %91, %101 : vector<8x128xi32>
    %c119_i32 = arith.constant 119 : i32
    %103 = tpu.dynamic_rotate %101 by %c119_i32 dim 1 : vector<8x128xi32>, i32 -> vector<8x128xi32>
    %104 = arith.addi %93, %103 : vector<8x128xi32>
    %c10_i32 = arith.constant 10 : i32
    %105 = tpu.dynamic_rotate %2 by %c10_i32 dim 1 : vector<8x128xf32>, i32 -> vector<8x128xf32>
    %c10_i32_13 = arith.constant 10 : i32
    %106 = tpu.dynamic_rotate %3 by %c10_i32_13 dim 1 : vector<8x128xi32>, i32 -> vector<8x128xi32>
    %107 = arith.cmpf ogt, %105, %2 : vector<8x128xf32>
    %108 = arith.cmpf oeq, %105, %2 : vector<8x128xf32>
    %109 = arith.cmpi slt, %106, %3 : vector<8x128xi32>
    %110 = arith.andi %108, %109 : vector<8x128xi1>
    %111 = arith.ori %107, %110 : vector<8x128xi1>
    %112 = arith.extui %111 : vector<8x128xi1> to vector<8x128xi32>
    %113 = arith.addi %102, %112 : vector<8x128xi32>
    %c118_i32 = arith.constant 118 : i32
    %114 = tpu.dynamic_rotate %112 by %c118_i32 dim 1 : vector<8x128xi32>, i32 -> vector<8x128xi32>
    %115 = arith.addi %104, %114 : vector<8x128xi32>
    %c11_i32 = arith.constant 11 : i32
    %116 = tpu.dynamic_rotate %2 by %c11_i32 dim 1 : vector<8x128xf32>, i32 -> vector<8x128xf32>
    %c11_i32_14 = arith.constant 11 : i32
    %117 = tpu.dynamic_rotate %3 by %c11_i32_14 dim 1 : vector<8x128xi32>, i32 -> vector<8x128xi32>
    %118 = arith.cmpf ogt, %116, %2 : vector<8x128xf32>
    %119 = arith.cmpf oeq, %116, %2 : vector<8x128xf32>
    %120 = arith.cmpi slt, %117, %3 : vector<8x128xi32>
    %121 = arith.andi %119, %120 : vector<8x128xi1>
    %122 = arith.ori %118, %121 : vector<8x128xi1>
    %123 = arith.extui %122 : vector<8x128xi1> to vector<8x128xi32>
    %124 = arith.addi %113, %123 : vector<8x128xi32>
    %c117_i32 = arith.constant 117 : i32
    %125 = tpu.dynamic_rotate %123 by %c117_i32 dim 1 : vector<8x128xi32>, i32 -> vector<8x128xi32>
    %126 = arith.addi %115, %125 : vector<8x128xi32>
    %c12_i32 = arith.constant 12 : i32
    %127 = tpu.dynamic_rotate %2 by %c12_i32 dim 1 : vector<8x128xf32>, i32 -> vector<8x128xf32>
    %c12_i32_15 = arith.constant 12 : i32
    %128 = tpu.dynamic_rotate %3 by %c12_i32_15 dim 1 : vector<8x128xi32>, i32 -> vector<8x128xi32>
    %129 = arith.cmpf ogt, %127, %2 : vector<8x128xf32>
    %130 = arith.cmpf oeq, %127, %2 : vector<8x128xf32>
    %131 = arith.cmpi slt, %128, %3 : vector<8x128xi32>
    %132 = arith.andi %130, %131 : vector<8x128xi1>
    %133 = arith.ori %129, %132 : vector<8x128xi1>
    %134 = arith.extui %133 : vector<8x128xi1> to vector<8x128xi32>
    %135 = arith.addi %124, %134 : vector<8x128xi32>
    %c116_i32 = arith.constant 116 : i32
    %136 = tpu.dynamic_rotate %134 by %c116_i32 dim 1 : vector<8x128xi32>, i32 -> vector<8x128xi32>
    %137 = arith.addi %126, %136 : vector<8x128xi32>
    %c13_i32 = arith.constant 13 : i32
    %138 = tpu.dynamic_rotate %2 by %c13_i32 dim 1 : vector<8x128xf32>, i32 -> vector<8x128xf32>
    %c13_i32_16 = arith.constant 13 : i32
    %139 = tpu.dynamic_rotate %3 by %c13_i32_16 dim 1 : vector<8x128xi32>, i32 -> vector<8x128xi32>
    %140 = arith.cmpf ogt, %138, %2 : vector<8x128xf32>
    %141 = arith.cmpf oeq, %138, %2 : vector<8x128xf32>
    %142 = arith.cmpi slt, %139, %3 : vector<8x128xi32>
    %143 = arith.andi %141, %142 : vector<8x128xi1>
    %144 = arith.ori %140, %143 : vector<8x128xi1>
    %145 = arith.extui %144 : vector<8x128xi1> to vector<8x128xi32>
    %146 = arith.addi %135, %145 : vector<8x128xi32>
    %c115_i32 = arith.constant 115 : i32
    %147 = tpu.dynamic_rotate %145 by %c115_i32 dim 1 : vector<8x128xi32>, i32 -> vector<8x128xi32>
    %148 = arith.addi %137, %147 : vector<8x128xi32>
    %c14_i32 = arith.constant 14 : i32
    %149 = tpu.dynamic_rotate %2 by %c14_i32 dim 1 : vector<8x128xf32>, i32 -> vector<8x128xf32>
    %c14_i32_17 = arith.constant 14 : i32
    %150 = tpu.dynamic_rotate %3 by %c14_i32_17 dim 1 : vector<8x128xi32>, i32 -> vector<8x128xi32>
    %151 = arith.cmpf ogt, %149, %2 : vector<8x128xf32>
    %152 = arith.cmpf oeq, %149, %2 : vector<8x128xf32>
    %153 = arith.cmpi slt, %150, %3 : vector<8x128xi32>
    %154 = arith.andi %152, %153 : vector<8x128xi1>
    %155 = arith.ori %151, %154 : vector<8x128xi1>
    %156 = arith.extui %155 : vector<8x128xi1> to vector<8x128xi32>
    %157 = arith.addi %146, %156 : vector<8x128xi32>
    %c114_i32 = arith.constant 114 : i32
    %158 = tpu.dynamic_rotate %156 by %c114_i32 dim 1 : vector<8x128xi32>, i32 -> vector<8x128xi32>
    %159 = arith.addi %148, %158 : vector<8x128xi32>
    %c15_i32 = arith.constant 15 : i32
    %160 = tpu.dynamic_rotate %2 by %c15_i32 dim 1 : vector<8x128xf32>, i32 -> vector<8x128xf32>
    %c15_i32_18 = arith.constant 15 : i32
    %161 = tpu.dynamic_rotate %3 by %c15_i32_18 dim 1 : vector<8x128xi32>, i32 -> vector<8x128xi32>
    %162 = arith.cmpf ogt, %160, %2 : vector<8x128xf32>
    %163 = arith.cmpf oeq, %160, %2 : vector<8x128xf32>
    %164 = arith.cmpi slt, %161, %3 : vector<8x128xi32>
    %165 = arith.andi %163, %164 : vector<8x128xi1>
    %166 = arith.ori %162, %165 : vector<8x128xi1>
    %167 = arith.extui %166 : vector<8x128xi1> to vector<8x128xi32>
    %168 = arith.addi %157, %167 : vector<8x128xi32>
    %c113_i32 = arith.constant 113 : i32
    %169 = tpu.dynamic_rotate %167 by %c113_i32 dim 1 : vector<8x128xi32>, i32 -> vector<8x128xi32>
    %170 = arith.addi %159, %169 : vector<8x128xi32>
    %c16_i32 = arith.constant 16 : i32
    %171 = tpu.dynamic_rotate %2 by %c16_i32 dim 1 : vector<8x128xf32>, i32 -> vector<8x128xf32>
    %c16_i32_19 = arith.constant 16 : i32
    %172 = tpu.dynamic_rotate %3 by %c16_i32_19 dim 1 : vector<8x128xi32>, i32 -> vector<8x128xi32>
    %173 = arith.cmpf ogt, %171, %2 : vector<8x128xf32>
    %174 = arith.cmpf oeq, %171, %2 : vector<8x128xf32>
    %175 = arith.cmpi slt, %172, %3 : vector<8x128xi32>
    %176 = arith.andi %174, %175 : vector<8x128xi1>
    %177 = arith.ori %173, %176 : vector<8x128xi1>
    %178 = arith.extui %177 : vector<8x128xi1> to vector<8x128xi32>
    %179 = arith.addi %168, %178 : vector<8x128xi32>
    %c112_i32 = arith.constant 112 : i32
    %180 = tpu.dynamic_rotate %178 by %c112_i32 dim 1 : vector<8x128xi32>, i32 -> vector<8x128xi32>
    %181 = arith.addi %170, %180 : vector<8x128xi32>
    %c17_i32 = arith.constant 17 : i32
    %182 = tpu.dynamic_rotate %2 by %c17_i32 dim 1 : vector<8x128xf32>, i32 -> vector<8x128xf32>
    %c17_i32_20 = arith.constant 17 : i32
    %183 = tpu.dynamic_rotate %3 by %c17_i32_20 dim 1 : vector<8x128xi32>, i32 -> vector<8x128xi32>
    %184 = arith.cmpf ogt, %182, %2 : vector<8x128xf32>
    %185 = arith.cmpf oeq, %182, %2 : vector<8x128xf32>
    %186 = arith.cmpi slt, %183, %3 : vector<8x128xi32>
    %187 = arith.andi %185, %186 : vector<8x128xi1>
    %188 = arith.ori %184, %187 : vector<8x128xi1>
    %189 = arith.extui %188 : vector<8x128xi1> to vector<8x128xi32>
    %190 = arith.addi %179, %189 : vector<8x128xi32>
    %c111_i32 = arith.constant 111 : i32
    %191 = tpu.dynamic_rotate %189 by %c111_i32 dim 1 : vector<8x128xi32>, i32 -> vector<8x128xi32>
    %192 = arith.addi %181, %191 : vector<8x128xi32>
    %c18_i32 = arith.constant 18 : i32
    %193 = tpu.dynamic_rotate %2 by %c18_i32 dim 1 : vector<8x128xf32>, i32 -> vector<8x128xf32>
    %c18_i32_21 = arith.constant 18 : i32
    %194 = tpu.dynamic_rotate %3 by %c18_i32_21 dim 1 : vector<8x128xi32>, i32 -> vector<8x128xi32>
    %195 = arith.cmpf ogt, %193, %2 : vector<8x128xf32>
    %196 = arith.cmpf oeq, %193, %2 : vector<8x128xf32>
    %197 = arith.cmpi slt, %194, %3 : vector<8x128xi32>
    %198 = arith.andi %196, %197 : vector<8x128xi1>
    %199 = arith.ori %195, %198 : vector<8x128xi1>
    %200 = arith.extui %199 : vector<8x128xi1> to vector<8x128xi32>
    %201 = arith.addi %190, %200 : vector<8x128xi32>
    %c110_i32 = arith.constant 110 : i32
    %202 = tpu.dynamic_rotate %200 by %c110_i32 dim 1 : vector<8x128xi32>, i32 -> vector<8x128xi32>
    %203 = arith.addi %192, %202 : vector<8x128xi32>
    %c19_i32 = arith.constant 19 : i32
    %204 = tpu.dynamic_rotate %2 by %c19_i32 dim 1 : vector<8x128xf32>, i32 -> vector<8x128xf32>
    %c19_i32_22 = arith.constant 19 : i32
    %205 = tpu.dynamic_rotate %3 by %c19_i32_22 dim 1 : vector<8x128xi32>, i32 -> vector<8x128xi32>
    %206 = arith.cmpf ogt, %204, %2 : vector<8x128xf32>
    %207 = arith.cmpf oeq, %204, %2 : vector<8x128xf32>
    %208 = arith.cmpi slt, %205, %3 : vector<8x128xi32>
    %209 = arith.andi %207, %208 : vector<8x128xi1>
    %210 = arith.ori %206, %209 : vector<8x128xi1>
    %211 = arith.extui %210 : vector<8x128xi1> to vector<8x128xi32>
    %212 = arith.addi %201, %211 : vector<8x128xi32>
    %c109_i32 = arith.constant 109 : i32
    %213 = tpu.dynamic_rotate %211 by %c109_i32 dim 1 : vector<8x128xi32>, i32 -> vector<8x128xi32>
    %214 = arith.addi %203, %213 : vector<8x128xi32>
    %c20_i32 = arith.constant 20 : i32
    %215 = tpu.dynamic_rotate %2 by %c20_i32 dim 1 : vector<8x128xf32>, i32 -> vector<8x128xf32>
    %c20_i32_23 = arith.constant 20 : i32
    %216 = tpu.dynamic_rotate %3 by %c20_i32_23 dim 1 : vector<8x128xi32>, i32 -> vector<8x128xi32>
    %217 = arith.cmpf ogt, %215, %2 : vector<8x128xf32>
    %218 = arith.cmpf oeq, %215, %2 : vector<8x128xf32>
    %219 = arith.cmpi slt, %216, %3 : vector<8x128xi32>
    %220 = arith.andi %218, %219 : vector<8x128xi1>
    %221 = arith.ori %217, %220 : vector<8x128xi1>
    %222 = arith.extui %221 : vector<8x128xi1> to vector<8x128xi32>
    %223 = arith.addi %212, %222 : vector<8x128xi32>
    %c108_i32 = arith.constant 108 : i32
    %224 = tpu.dynamic_rotate %222 by %c108_i32 dim 1 : vector<8x128xi32>, i32 -> vector<8x128xi32>
    %225 = arith.addi %214, %224 : vector<8x128xi32>
    %c21_i32 = arith.constant 21 : i32
    %226 = tpu.dynamic_rotate %2 by %c21_i32 dim 1 : vector<8x128xf32>, i32 -> vector<8x128xf32>
    %c21_i32_24 = arith.constant 21 : i32
    %227 = tpu.dynamic_rotate %3 by %c21_i32_24 dim 1 : vector<8x128xi32>, i32 -> vector<8x128xi32>
    %228 = arith.cmpf ogt, %226, %2 : vector<8x128xf32>
    %229 = arith.cmpf oeq, %226, %2 : vector<8x128xf32>
    %230 = arith.cmpi slt, %227, %3 : vector<8x128xi32>
    %231 = arith.andi %229, %230 : vector<8x128xi1>
    %232 = arith.ori %228, %231 : vector<8x128xi1>
    %233 = arith.extui %232 : vector<8x128xi1> to vector<8x128xi32>
    %234 = arith.addi %223, %233 : vector<8x128xi32>
    %c107_i32 = arith.constant 107 : i32
    %235 = tpu.dynamic_rotate %233 by %c107_i32 dim 1 : vector<8x128xi32>, i32 -> vector<8x128xi32>
    %236 = arith.addi %225, %235 : vector<8x128xi32>
    %c22_i32 = arith.constant 22 : i32
    %237 = tpu.dynamic_rotate %2 by %c22_i32 dim 1 : vector<8x128xf32>, i32 -> vector<8x128xf32>
    %c22_i32_25 = arith.constant 22 : i32
    %238 = tpu.dynamic_rotate %3 by %c22_i32_25 dim 1 : vector<8x128xi32>, i32 -> vector<8x128xi32>
    %239 = arith.cmpf ogt, %237, %2 : vector<8x128xf32>
    %240 = arith.cmpf oeq, %237, %2 : vector<8x128xf32>
    %241 = arith.cmpi slt, %238, %3 : vector<8x128xi32>
    %242 = arith.andi %240, %241 : vector<8x128xi1>
    %243 = arith.ori %239, %242 : vector<8x128xi1>
    %244 = arith.extui %243 : vector<8x128xi1> to vector<8x128xi32>
    %245 = arith.addi %234, %244 : vector<8x128xi32>
    %c106_i32 = arith.constant 106 : i32
    %246 = tpu.dynamic_rotate %244 by %c106_i32 dim 1 : vector<8x128xi32>, i32 -> vector<8x128xi32>
    %247 = arith.addi %236, %246 : vector<8x128xi32>
    %c23_i32 = arith.constant 23 : i32
    %248 = tpu.dynamic_rotate %2 by %c23_i32 dim 1 : vector<8x128xf32>, i32 -> vector<8x128xf32>
    %c23_i32_26 = arith.constant 23 : i32
    %249 = tpu.dynamic_rotate %3 by %c23_i32_26 dim 1 : vector<8x128xi32>, i32 -> vector<8x128xi32>
    %250 = arith.cmpf ogt, %248, %2 : vector<8x128xf32>
    %251 = arith.cmpf oeq, %248, %2 : vector<8x128xf32>
    %252 = arith.cmpi slt, %249, %3 : vector<8x128xi32>
    %253 = arith.andi %251, %252 : vector<8x128xi1>
    %254 = arith.ori %250, %253 : vector<8x128xi1>
    %255 = arith.extui %254 : vector<8x128xi1> to vector<8x128xi32>
    %256 = arith.addi %245, %255 : vector<8x128xi32>
    %c105_i32 = arith.constant 105 : i32
    %257 = tpu.dynamic_rotate %255 by %c105_i32 dim 1 : vector<8x128xi32>, i32 -> vector<8x128xi32>
    %258 = arith.addi %247, %257 : vector<8x128xi32>
    %c24_i32 = arith.constant 24 : i32
    %259 = tpu.dynamic_rotate %2 by %c24_i32 dim 1 : vector<8x128xf32>, i32 -> vector<8x128xf32>
    %c24_i32_27 = arith.constant 24 : i32
    %260 = tpu.dynamic_rotate %3 by %c24_i32_27 dim 1 : vector<8x128xi32>, i32 -> vector<8x128xi32>
    %261 = arith.cmpf ogt, %259, %2 : vector<8x128xf32>
    %262 = arith.cmpf oeq, %259, %2 : vector<8x128xf32>
    %263 = arith.cmpi slt, %260, %3 : vector<8x128xi32>
    %264 = arith.andi %262, %263 : vector<8x128xi1>
    %265 = arith.ori %261, %264 : vector<8x128xi1>
    %266 = arith.extui %265 : vector<8x128xi1> to vector<8x128xi32>
    %267 = arith.addi %256, %266 : vector<8x128xi32>
    %c104_i32 = arith.constant 104 : i32
    %268 = tpu.dynamic_rotate %266 by %c104_i32 dim 1 : vector<8x128xi32>, i32 -> vector<8x128xi32>
    %269 = arith.addi %258, %268 : vector<8x128xi32>
    %c25_i32 = arith.constant 25 : i32
    %270 = tpu.dynamic_rotate %2 by %c25_i32 dim 1 : vector<8x128xf32>, i32 -> vector<8x128xf32>
    %c25_i32_28 = arith.constant 25 : i32
    %271 = tpu.dynamic_rotate %3 by %c25_i32_28 dim 1 : vector<8x128xi32>, i32 -> vector<8x128xi32>
    %272 = arith.cmpf ogt, %270, %2 : vector<8x128xf32>
    %273 = arith.cmpf oeq, %270, %2 : vector<8x128xf32>
    %274 = arith.cmpi slt, %271, %3 : vector<8x128xi32>
    %275 = arith.andi %273, %274 : vector<8x128xi1>
    %276 = arith.ori %272, %275 : vector<8x128xi1>
    %277 = arith.extui %276 : vector<8x128xi1> to vector<8x128xi32>
    %278 = arith.addi %267, %277 : vector<8x128xi32>
    %c103_i32 = arith.constant 103 : i32
    %279 = tpu.dynamic_rotate %277 by %c103_i32 dim 1 : vector<8x128xi32>, i32 -> vector<8x128xi32>
    %280 = arith.addi %269, %279 : vector<8x128xi32>
    %c26_i32 = arith.constant 26 : i32
    %281 = tpu.dynamic_rotate %2 by %c26_i32 dim 1 : vector<8x128xf32>, i32 -> vector<8x128xf32>
    %c26_i32_29 = arith.constant 26 : i32
    %282 = tpu.dynamic_rotate %3 by %c26_i32_29 dim 1 : vector<8x128xi32>, i32 -> vector<8x128xi32>
    %283 = arith.cmpf ogt, %281, %2 : vector<8x128xf32>
    %284 = arith.cmpf oeq, %281, %2 : vector<8x128xf32>
    %285 = arith.cmpi slt, %282, %3 : vector<8x128xi32>
    %286 = arith.andi %284, %285 : vector<8x128xi1>
    %287 = arith.ori %283, %286 : vector<8x128xi1>
    %288 = arith.extui %287 : vector<8x128xi1> to vector<8x128xi32>
    %289 = arith.addi %278, %288 : vector<8x128xi32>
    %c102_i32 = arith.constant 102 : i32
    %290 = tpu.dynamic_rotate %288 by %c102_i32 dim 1 : vector<8x128xi32>, i32 -> vector<8x128xi32>
    %291 = arith.addi %280, %290 : vector<8x128xi32>
    %c27_i32 = arith.constant 27 : i32
    %292 = tpu.dynamic_rotate %2 by %c27_i32 dim 1 : vector<8x128xf32>, i32 -> vector<8x128xf32>
    %c27_i32_30 = arith.constant 27 : i32
    %293 = tpu.dynamic_rotate %3 by %c27_i32_30 dim 1 : vector<8x128xi32>, i32 -> vector<8x128xi32>
    %294 = arith.cmpf ogt, %292, %2 : vector<8x128xf32>
    %295 = arith.cmpf oeq, %292, %2 : vector<8x128xf32>
    %296 = arith.cmpi slt, %293, %3 : vector<8x128xi32>
    %297 = arith.andi %295, %296 : vector<8x128xi1>
    %298 = arith.ori %294, %297 : vector<8x128xi1>
    %299 = arith.extui %298 : vector<8x128xi1> to vector<8x128xi32>
    %300 = arith.addi %289, %299 : vector<8x128xi32>
    %c101_i32 = arith.constant 101 : i32
    %301 = tpu.dynamic_rotate %299 by %c101_i32 dim 1 : vector<8x128xi32>, i32 -> vector<8x128xi32>
    %302 = arith.addi %291, %301 : vector<8x128xi32>
    %c28_i32 = arith.constant 28 : i32
    %303 = tpu.dynamic_rotate %2 by %c28_i32 dim 1 : vector<8x128xf32>, i32 -> vector<8x128xf32>
    %c28_i32_31 = arith.constant 28 : i32
    %304 = tpu.dynamic_rotate %3 by %c28_i32_31 dim 1 : vector<8x128xi32>, i32 -> vector<8x128xi32>
    %305 = arith.cmpf ogt, %303, %2 : vector<8x128xf32>
    %306 = arith.cmpf oeq, %303, %2 : vector<8x128xf32>
    %307 = arith.cmpi slt, %304, %3 : vector<8x128xi32>
    %308 = arith.andi %306, %307 : vector<8x128xi1>
    %309 = arith.ori %305, %308 : vector<8x128xi1>
    %310 = arith.extui %309 : vector<8x128xi1> to vector<8x128xi32>
    %311 = arith.addi %300, %310 : vector<8x128xi32>
    %c100_i32 = arith.constant 100 : i32
    %312 = tpu.dynamic_rotate %310 by %c100_i32 dim 1 : vector<8x128xi32>, i32 -> vector<8x128xi32>
    %313 = arith.addi %302, %312 : vector<8x128xi32>
    %c29_i32 = arith.constant 29 : i32
    %314 = tpu.dynamic_rotate %2 by %c29_i32 dim 1 : vector<8x128xf32>, i32 -> vector<8x128xf32>
    %c29_i32_32 = arith.constant 29 : i32
    %315 = tpu.dynamic_rotate %3 by %c29_i32_32 dim 1 : vector<8x128xi32>, i32 -> vector<8x128xi32>
    %316 = arith.cmpf ogt, %314, %2 : vector<8x128xf32>
    %317 = arith.cmpf oeq, %314, %2 : vector<8x128xf32>
    %318 = arith.cmpi slt, %315, %3 : vector<8x128xi32>
    %319 = arith.andi %317, %318 : vector<8x128xi1>
    %320 = arith.ori %316, %319 : vector<8x128xi1>
    %321 = arith.extui %320 : vector<8x128xi1> to vector<8x128xi32>
    %322 = arith.addi %311, %321 : vector<8x128xi32>
    %c99_i32 = arith.constant 99 : i32
    %323 = tpu.dynamic_rotate %321 by %c99_i32 dim 1 : vector<8x128xi32>, i32 -> vector<8x128xi32>
    %324 = arith.addi %313, %323 : vector<8x128xi32>
    %c30_i32 = arith.constant 30 : i32
    %325 = tpu.dynamic_rotate %2 by %c30_i32 dim 1 : vector<8x128xf32>, i32 -> vector<8x128xf32>
    %c30_i32_33 = arith.constant 30 : i32
    %326 = tpu.dynamic_rotate %3 by %c30_i32_33 dim 1 : vector<8x128xi32>, i32 -> vector<8x128xi32>
    %327 = arith.cmpf ogt, %325, %2 : vector<8x128xf32>
    %328 = arith.cmpf oeq, %325, %2 : vector<8x128xf32>
    %329 = arith.cmpi slt, %326, %3 : vector<8x128xi32>
    %330 = arith.andi %328, %329 : vector<8x128xi1>
    %331 = arith.ori %327, %330 : vector<8x128xi1>
    %332 = arith.extui %331 : vector<8x128xi1> to vector<8x128xi32>
    %333 = arith.addi %322, %332 : vector<8x128xi32>
    %c98_i32 = arith.constant 98 : i32
    %334 = tpu.dynamic_rotate %332 by %c98_i32 dim 1 : vector<8x128xi32>, i32 -> vector<8x128xi32>
    %335 = arith.addi %324, %334 : vector<8x128xi32>
    %c31_i32 = arith.constant 31 : i32
    %336 = tpu.dynamic_rotate %2 by %c31_i32 dim 1 : vector<8x128xf32>, i32 -> vector<8x128xf32>
    %c31_i32_34 = arith.constant 31 : i32
    %337 = tpu.dynamic_rotate %3 by %c31_i32_34 dim 1 : vector<8x128xi32>, i32 -> vector<8x128xi32>
    %338 = arith.cmpf ogt, %336, %2 : vector<8x128xf32>
    %339 = arith.cmpf oeq, %336, %2 : vector<8x128xf32>
    %340 = arith.cmpi slt, %337, %3 : vector<8x128xi32>
    %341 = arith.andi %339, %340 : vector<8x128xi1>
    %342 = arith.ori %338, %341 : vector<8x128xi1>
    %343 = arith.extui %342 : vector<8x128xi1> to vector<8x128xi32>
    %344 = arith.addi %333, %343 : vector<8x128xi32>
    %c97_i32 = arith.constant 97 : i32
    %345 = tpu.dynamic_rotate %343 by %c97_i32 dim 1 : vector<8x128xi32>, i32 -> vector<8x128xi32>
    %346 = arith.addi %335, %345 : vector<8x128xi32>
    %c32_i32 = arith.constant 32 : i32
    %347 = tpu.dynamic_rotate %2 by %c32_i32 dim 1 : vector<8x128xf32>, i32 -> vector<8x128xf32>
    %c32_i32_35 = arith.constant 32 : i32
    %348 = tpu.dynamic_rotate %3 by %c32_i32_35 dim 1 : vector<8x128xi32>, i32 -> vector<8x128xi32>
    %349 = arith.cmpf ogt, %347, %2 : vector<8x128xf32>
    %350 = arith.cmpf oeq, %347, %2 : vector<8x128xf32>
    %351 = arith.cmpi slt, %348, %3 : vector<8x128xi32>
    %352 = arith.andi %350, %351 : vector<8x128xi1>
    %353 = arith.ori %349, %352 : vector<8x128xi1>
    %354 = arith.extui %353 : vector<8x128xi1> to vector<8x128xi32>
    %355 = arith.addi %344, %354 : vector<8x128xi32>
    %c96_i32 = arith.constant 96 : i32
    %356 = tpu.dynamic_rotate %354 by %c96_i32 dim 1 : vector<8x128xi32>, i32 -> vector<8x128xi32>
    %357 = arith.addi %346, %356 : vector<8x128xi32>
    %c33_i32 = arith.constant 33 : i32
    %358 = tpu.dynamic_rotate %2 by %c33_i32 dim 1 : vector<8x128xf32>, i32 -> vector<8x128xf32>
    %c33_i32_36 = arith.constant 33 : i32
    %359 = tpu.dynamic_rotate %3 by %c33_i32_36 dim 1 : vector<8x128xi32>, i32 -> vector<8x128xi32>
    %360 = arith.cmpf ogt, %358, %2 : vector<8x128xf32>
    %361 = arith.cmpf oeq, %358, %2 : vector<8x128xf32>
    %362 = arith.cmpi slt, %359, %3 : vector<8x128xi32>
    %363 = arith.andi %361, %362 : vector<8x128xi1>
    %364 = arith.ori %360, %363 : vector<8x128xi1>
    %365 = arith.extui %364 : vector<8x128xi1> to vector<8x128xi32>
    %366 = arith.addi %355, %365 : vector<8x128xi32>
    %c95_i32 = arith.constant 95 : i32
    %367 = tpu.dynamic_rotate %365 by %c95_i32 dim 1 : vector<8x128xi32>, i32 -> vector<8x128xi32>
    %368 = arith.addi %357, %367 : vector<8x128xi32>
    %c34_i32 = arith.constant 34 : i32
    %369 = tpu.dynamic_rotate %2 by %c34_i32 dim 1 : vector<8x128xf32>, i32 -> vector<8x128xf32>
    %c34_i32_37 = arith.constant 34 : i32
    %370 = tpu.dynamic_rotate %3 by %c34_i32_37 dim 1 : vector<8x128xi32>, i32 -> vector<8x128xi32>
    %371 = arith.cmpf ogt, %369, %2 : vector<8x128xf32>
    %372 = arith.cmpf oeq, %369, %2 : vector<8x128xf32>
    %373 = arith.cmpi slt, %370, %3 : vector<8x128xi32>
    %374 = arith.andi %372, %373 : vector<8x128xi1>
    %375 = arith.ori %371, %374 : vector<8x128xi1>
    %376 = arith.extui %375 : vector<8x128xi1> to vector<8x128xi32>
    %377 = arith.addi %366, %376 : vector<8x128xi32>
    %c94_i32 = arith.constant 94 : i32
    %378 = tpu.dynamic_rotate %376 by %c94_i32 dim 1 : vector<8x128xi32>, i32 -> vector<8x128xi32>
    %379 = arith.addi %368, %378 : vector<8x128xi32>
    %c35_i32 = arith.constant 35 : i32
    %380 = tpu.dynamic_rotate %2 by %c35_i32 dim 1 : vector<8x128xf32>, i32 -> vector<8x128xf32>
    %c35_i32_38 = arith.constant 35 : i32
    %381 = tpu.dynamic_rotate %3 by %c35_i32_38 dim 1 : vector<8x128xi32>, i32 -> vector<8x128xi32>
    %382 = arith.cmpf ogt, %380, %2 : vector<8x128xf32>
    %383 = arith.cmpf oeq, %380, %2 : vector<8x128xf32>
    %384 = arith.cmpi slt, %381, %3 : vector<8x128xi32>
    %385 = arith.andi %383, %384 : vector<8x128xi1>
    %386 = arith.ori %382, %385 : vector<8x128xi1>
    %387 = arith.extui %386 : vector<8x128xi1> to vector<8x128xi32>
    %388 = arith.addi %377, %387 : vector<8x128xi32>
    %c93_i32 = arith.constant 93 : i32
    %389 = tpu.dynamic_rotate %387 by %c93_i32 dim 1 : vector<8x128xi32>, i32 -> vector<8x128xi32>
    %390 = arith.addi %379, %389 : vector<8x128xi32>
    %c36_i32 = arith.constant 36 : i32
    %391 = tpu.dynamic_rotate %2 by %c36_i32 dim 1 : vector<8x128xf32>, i32 -> vector<8x128xf32>
    %c36_i32_39 = arith.constant 36 : i32
    %392 = tpu.dynamic_rotate %3 by %c36_i32_39 dim 1 : vector<8x128xi32>, i32 -> vector<8x128xi32>
    %393 = arith.cmpf ogt, %391, %2 : vector<8x128xf32>
    %394 = arith.cmpf oeq, %391, %2 : vector<8x128xf32>
    %395 = arith.cmpi slt, %392, %3 : vector<8x128xi32>
    %396 = arith.andi %394, %395 : vector<8x128xi1>
    %397 = arith.ori %393, %396 : vector<8x128xi1>
    %398 = arith.extui %397 : vector<8x128xi1> to vector<8x128xi32>
    %399 = arith.addi %388, %398 : vector<8x128xi32>
    %c92_i32 = arith.constant 92 : i32
    %400 = tpu.dynamic_rotate %398 by %c92_i32 dim 1 : vector<8x128xi32>, i32 -> vector<8x128xi32>
    %401 = arith.addi %390, %400 : vector<8x128xi32>
    %c37_i32 = arith.constant 37 : i32
    %402 = tpu.dynamic_rotate %2 by %c37_i32 dim 1 : vector<8x128xf32>, i32 -> vector<8x128xf32>
    %c37_i32_40 = arith.constant 37 : i32
    %403 = tpu.dynamic_rotate %3 by %c37_i32_40 dim 1 : vector<8x128xi32>, i32 -> vector<8x128xi32>
    %404 = arith.cmpf ogt, %402, %2 : vector<8x128xf32>
    %405 = arith.cmpf oeq, %402, %2 : vector<8x128xf32>
    %406 = arith.cmpi slt, %403, %3 : vector<8x128xi32>
    %407 = arith.andi %405, %406 : vector<8x128xi1>
    %408 = arith.ori %404, %407 : vector<8x128xi1>
    %409 = arith.extui %408 : vector<8x128xi1> to vector<8x128xi32>
    %410 = arith.addi %399, %409 : vector<8x128xi32>
    %c91_i32 = arith.constant 91 : i32
    %411 = tpu.dynamic_rotate %409 by %c91_i32 dim 1 : vector<8x128xi32>, i32 -> vector<8x128xi32>
    %412 = arith.addi %401, %411 : vector<8x128xi32>
    %c38_i32 = arith.constant 38 : i32
    %413 = tpu.dynamic_rotate %2 by %c38_i32 dim 1 : vector<8x128xf32>, i32 -> vector<8x128xf32>
    %c38_i32_41 = arith.constant 38 : i32
    %414 = tpu.dynamic_rotate %3 by %c38_i32_41 dim 1 : vector<8x128xi32>, i32 -> vector<8x128xi32>
    %415 = arith.cmpf ogt, %413, %2 : vector<8x128xf32>
    %416 = arith.cmpf oeq, %413, %2 : vector<8x128xf32>
    %417 = arith.cmpi slt, %414, %3 : vector<8x128xi32>
    %418 = arith.andi %416, %417 : vector<8x128xi1>
    %419 = arith.ori %415, %418 : vector<8x128xi1>
    %420 = arith.extui %419 : vector<8x128xi1> to vector<8x128xi32>
    %421 = arith.addi %410, %420 : vector<8x128xi32>
    %c90_i32 = arith.constant 90 : i32
    %422 = tpu.dynamic_rotate %420 by %c90_i32 dim 1 : vector<8x128xi32>, i32 -> vector<8x128xi32>
    %423 = arith.addi %412, %422 : vector<8x128xi32>
    %c39_i32 = arith.constant 39 : i32
    %424 = tpu.dynamic_rotate %2 by %c39_i32 dim 1 : vector<8x128xf32>, i32 -> vector<8x128xf32>
    %c39_i32_42 = arith.constant 39 : i32
    %425 = tpu.dynamic_rotate %3 by %c39_i32_42 dim 1 : vector<8x128xi32>, i32 -> vector<8x128xi32>
    %426 = arith.cmpf ogt, %424, %2 : vector<8x128xf32>
    %427 = arith.cmpf oeq, %424, %2 : vector<8x128xf32>
    %428 = arith.cmpi slt, %425, %3 : vector<8x128xi32>
    %429 = arith.andi %427, %428 : vector<8x128xi1>
    %430 = arith.ori %426, %429 : vector<8x128xi1>
    %431 = arith.extui %430 : vector<8x128xi1> to vector<8x128xi32>
    %432 = arith.addi %421, %431 : vector<8x128xi32>
    %c89_i32 = arith.constant 89 : i32
    %433 = tpu.dynamic_rotate %431 by %c89_i32 dim 1 : vector<8x128xi32>, i32 -> vector<8x128xi32>
    %434 = arith.addi %423, %433 : vector<8x128xi32>
    %c40_i32 = arith.constant 40 : i32
    %435 = tpu.dynamic_rotate %2 by %c40_i32 dim 1 : vector<8x128xf32>, i32 -> vector<8x128xf32>
    %c40_i32_43 = arith.constant 40 : i32
    %436 = tpu.dynamic_rotate %3 by %c40_i32_43 dim 1 : vector<8x128xi32>, i32 -> vector<8x128xi32>
    %437 = arith.cmpf ogt, %435, %2 : vector<8x128xf32>
    %438 = arith.cmpf oeq, %435, %2 : vector<8x128xf32>
    %439 = arith.cmpi slt, %436, %3 : vector<8x128xi32>
    %440 = arith.andi %438, %439 : vector<8x128xi1>
    %441 = arith.ori %437, %440 : vector<8x128xi1>
    %442 = arith.extui %441 : vector<8x128xi1> to vector<8x128xi32>
    %443 = arith.addi %432, %442 : vector<8x128xi32>
    %c88_i32 = arith.constant 88 : i32
    %444 = tpu.dynamic_rotate %442 by %c88_i32 dim 1 : vector<8x128xi32>, i32 -> vector<8x128xi32>
    %445 = arith.addi %434, %444 : vector<8x128xi32>
    %c41_i32 = arith.constant 41 : i32
    %446 = tpu.dynamic_rotate %2 by %c41_i32 dim 1 : vector<8x128xf32>, i32 -> vector<8x128xf32>
    %c41_i32_44 = arith.constant 41 : i32
    %447 = tpu.dynamic_rotate %3 by %c41_i32_44 dim 1 : vector<8x128xi32>, i32 -> vector<8x128xi32>
    %448 = arith.cmpf ogt, %446, %2 : vector<8x128xf32>
    %449 = arith.cmpf oeq, %446, %2 : vector<8x128xf32>
    %450 = arith.cmpi slt, %447, %3 : vector<8x128xi32>
    %451 = arith.andi %449, %450 : vector<8x128xi1>
    %452 = arith.ori %448, %451 : vector<8x128xi1>
    %453 = arith.extui %452 : vector<8x128xi1> to vector<8x128xi32>
    %454 = arith.addi %443, %453 : vector<8x128xi32>
    %c87_i32 = arith.constant 87 : i32
    %455 = tpu.dynamic_rotate %453 by %c87_i32 dim 1 : vector<8x128xi32>, i32 -> vector<8x128xi32>
    %456 = arith.addi %445, %455 : vector<8x128xi32>
    %c42_i32 = arith.constant 42 : i32
    %457 = tpu.dynamic_rotate %2 by %c42_i32 dim 1 : vector<8x128xf32>, i32 -> vector<8x128xf32>
    %c42_i32_45 = arith.constant 42 : i32
    %458 = tpu.dynamic_rotate %3 by %c42_i32_45 dim 1 : vector<8x128xi32>, i32 -> vector<8x128xi32>
    %459 = arith.cmpf ogt, %457, %2 : vector<8x128xf32>
    %460 = arith.cmpf oeq, %457, %2 : vector<8x128xf32>
    %461 = arith.cmpi slt, %458, %3 : vector<8x128xi32>
    %462 = arith.andi %460, %461 : vector<8x128xi1>
    %463 = arith.ori %459, %462 : vector<8x128xi1>
    %464 = arith.extui %463 : vector<8x128xi1> to vector<8x128xi32>
    %465 = arith.addi %454, %464 : vector<8x128xi32>
    %c86_i32 = arith.constant 86 : i32
    %466 = tpu.dynamic_rotate %464 by %c86_i32 dim 1 : vector<8x128xi32>, i32 -> vector<8x128xi32>
    %467 = arith.addi %456, %466 : vector<8x128xi32>
    %c43_i32 = arith.constant 43 : i32
    %468 = tpu.dynamic_rotate %2 by %c43_i32 dim 1 : vector<8x128xf32>, i32 -> vector<8x128xf32>
    %c43_i32_46 = arith.constant 43 : i32
    %469 = tpu.dynamic_rotate %3 by %c43_i32_46 dim 1 : vector<8x128xi32>, i32 -> vector<8x128xi32>
    %470 = arith.cmpf ogt, %468, %2 : vector<8x128xf32>
    %471 = arith.cmpf oeq, %468, %2 : vector<8x128xf32>
    %472 = arith.cmpi slt, %469, %3 : vector<8x128xi32>
    %473 = arith.andi %471, %472 : vector<8x128xi1>
    %474 = arith.ori %470, %473 : vector<8x128xi1>
    %475 = arith.extui %474 : vector<8x128xi1> to vector<8x128xi32>
    %476 = arith.addi %465, %475 : vector<8x128xi32>
    %c85_i32 = arith.constant 85 : i32
    %477 = tpu.dynamic_rotate %475 by %c85_i32 dim 1 : vector<8x128xi32>, i32 -> vector<8x128xi32>
    %478 = arith.addi %467, %477 : vector<8x128xi32>
    %c44_i32 = arith.constant 44 : i32
    %479 = tpu.dynamic_rotate %2 by %c44_i32 dim 1 : vector<8x128xf32>, i32 -> vector<8x128xf32>
    %c44_i32_47 = arith.constant 44 : i32
    %480 = tpu.dynamic_rotate %3 by %c44_i32_47 dim 1 : vector<8x128xi32>, i32 -> vector<8x128xi32>
    %481 = arith.cmpf ogt, %479, %2 : vector<8x128xf32>
    %482 = arith.cmpf oeq, %479, %2 : vector<8x128xf32>
    %483 = arith.cmpi slt, %480, %3 : vector<8x128xi32>
    %484 = arith.andi %482, %483 : vector<8x128xi1>
    %485 = arith.ori %481, %484 : vector<8x128xi1>
    %486 = arith.extui %485 : vector<8x128xi1> to vector<8x128xi32>
    %487 = arith.addi %476, %486 : vector<8x128xi32>
    %c84_i32 = arith.constant 84 : i32
    %488 = tpu.dynamic_rotate %486 by %c84_i32 dim 1 : vector<8x128xi32>, i32 -> vector<8x128xi32>
    %489 = arith.addi %478, %488 : vector<8x128xi32>
    %c45_i32 = arith.constant 45 : i32
    %490 = tpu.dynamic_rotate %2 by %c45_i32 dim 1 : vector<8x128xf32>, i32 -> vector<8x128xf32>
    %c45_i32_48 = arith.constant 45 : i32
    %491 = tpu.dynamic_rotate %3 by %c45_i32_48 dim 1 : vector<8x128xi32>, i32 -> vector<8x128xi32>
    %492 = arith.cmpf ogt, %490, %2 : vector<8x128xf32>
    %493 = arith.cmpf oeq, %490, %2 : vector<8x128xf32>
    %494 = arith.cmpi slt, %491, %3 : vector<8x128xi32>
    %495 = arith.andi %493, %494 : vector<8x128xi1>
    %496 = arith.ori %492, %495 : vector<8x128xi1>
    %497 = arith.extui %496 : vector<8x128xi1> to vector<8x128xi32>
    %498 = arith.addi %487, %497 : vector<8x128xi32>
    %c83_i32 = arith.constant 83 : i32
    %499 = tpu.dynamic_rotate %497 by %c83_i32 dim 1 : vector<8x128xi32>, i32 -> vector<8x128xi32>
    %500 = arith.addi %489, %499 : vector<8x128xi32>
    %c46_i32 = arith.constant 46 : i32
    %501 = tpu.dynamic_rotate %2 by %c46_i32 dim 1 : vector<8x128xf32>, i32 -> vector<8x128xf32>
    %c46_i32_49 = arith.constant 46 : i32
    %502 = tpu.dynamic_rotate %3 by %c46_i32_49 dim 1 : vector<8x128xi32>, i32 -> vector<8x128xi32>
    %503 = arith.cmpf ogt, %501, %2 : vector<8x128xf32>
    %504 = arith.cmpf oeq, %501, %2 : vector<8x128xf32>
    %505 = arith.cmpi slt, %502, %3 : vector<8x128xi32>
    %506 = arith.andi %504, %505 : vector<8x128xi1>
    %507 = arith.ori %503, %506 : vector<8x128xi1>
    %508 = arith.extui %507 : vector<8x128xi1> to vector<8x128xi32>
    %509 = arith.addi %498, %508 : vector<8x128xi32>
    %c82_i32 = arith.constant 82 : i32
    %510 = tpu.dynamic_rotate %508 by %c82_i32 dim 1 : vector<8x128xi32>, i32 -> vector<8x128xi32>
    %511 = arith.addi %500, %510 : vector<8x128xi32>
    %c47_i32 = arith.constant 47 : i32
    %512 = tpu.dynamic_rotate %2 by %c47_i32 dim 1 : vector<8x128xf32>, i32 -> vector<8x128xf32>
    %c47_i32_50 = arith.constant 47 : i32
    %513 = tpu.dynamic_rotate %3 by %c47_i32_50 dim 1 : vector<8x128xi32>, i32 -> vector<8x128xi32>
    %514 = arith.cmpf ogt, %512, %2 : vector<8x128xf32>
    %515 = arith.cmpf oeq, %512, %2 : vector<8x128xf32>
    %516 = arith.cmpi slt, %513, %3 : vector<8x128xi32>
    %517 = arith.andi %515, %516 : vector<8x128xi1>
    %518 = arith.ori %514, %517 : vector<8x128xi1>
    %519 = arith.extui %518 : vector<8x128xi1> to vector<8x128xi32>
    %520 = arith.addi %509, %519 : vector<8x128xi32>
    %c81_i32 = arith.constant 81 : i32
    %521 = tpu.dynamic_rotate %519 by %c81_i32 dim 1 : vector<8x128xi32>, i32 -> vector<8x128xi32>
    %522 = arith.addi %511, %521 : vector<8x128xi32>
    %c48_i32 = arith.constant 48 : i32
    %523 = tpu.dynamic_rotate %2 by %c48_i32 dim 1 : vector<8x128xf32>, i32 -> vector<8x128xf32>
    %c48_i32_51 = arith.constant 48 : i32
    %524 = tpu.dynamic_rotate %3 by %c48_i32_51 dim 1 : vector<8x128xi32>, i32 -> vector<8x128xi32>
    %525 = arith.cmpf ogt, %523, %2 : vector<8x128xf32>
    %526 = arith.cmpf oeq, %523, %2 : vector<8x128xf32>
    %527 = arith.cmpi slt, %524, %3 : vector<8x128xi32>
    %528 = arith.andi %526, %527 : vector<8x128xi1>
    %529 = arith.ori %525, %528 : vector<8x128xi1>
    %530 = arith.extui %529 : vector<8x128xi1> to vector<8x128xi32>
    %531 = arith.addi %520, %530 : vector<8x128xi32>
    %c80_i32 = arith.constant 80 : i32
    %532 = tpu.dynamic_rotate %530 by %c80_i32 dim 1 : vector<8x128xi32>, i32 -> vector<8x128xi32>
    %533 = arith.addi %522, %532 : vector<8x128xi32>
    %c49_i32 = arith.constant 49 : i32
    %534 = tpu.dynamic_rotate %2 by %c49_i32 dim 1 : vector<8x128xf32>, i32 -> vector<8x128xf32>
    %c49_i32_52 = arith.constant 49 : i32
    %535 = tpu.dynamic_rotate %3 by %c49_i32_52 dim 1 : vector<8x128xi32>, i32 -> vector<8x128xi32>
    %536 = arith.cmpf ogt, %534, %2 : vector<8x128xf32>
    %537 = arith.cmpf oeq, %534, %2 : vector<8x128xf32>
    %538 = arith.cmpi slt, %535, %3 : vector<8x128xi32>
    %539 = arith.andi %537, %538 : vector<8x128xi1>
    %540 = arith.ori %536, %539 : vector<8x128xi1>
    %541 = arith.extui %540 : vector<8x128xi1> to vector<8x128xi32>
    %542 = arith.addi %531, %541 : vector<8x128xi32>
    %c79_i32 = arith.constant 79 : i32
    %543 = tpu.dynamic_rotate %541 by %c79_i32 dim 1 : vector<8x128xi32>, i32 -> vector<8x128xi32>
    %544 = arith.addi %533, %543 : vector<8x128xi32>
    %c50_i32 = arith.constant 50 : i32
    %545 = tpu.dynamic_rotate %2 by %c50_i32 dim 1 : vector<8x128xf32>, i32 -> vector<8x128xf32>
    %c50_i32_53 = arith.constant 50 : i32
    %546 = tpu.dynamic_rotate %3 by %c50_i32_53 dim 1 : vector<8x128xi32>, i32 -> vector<8x128xi32>
    %547 = arith.cmpf ogt, %545, %2 : vector<8x128xf32>
    %548 = arith.cmpf oeq, %545, %2 : vector<8x128xf32>
    %549 = arith.cmpi slt, %546, %3 : vector<8x128xi32>
    %550 = arith.andi %548, %549 : vector<8x128xi1>
    %551 = arith.ori %547, %550 : vector<8x128xi1>
    %552 = arith.extui %551 : vector<8x128xi1> to vector<8x128xi32>
    %553 = arith.addi %542, %552 : vector<8x128xi32>
    %c78_i32 = arith.constant 78 : i32
    %554 = tpu.dynamic_rotate %552 by %c78_i32 dim 1 : vector<8x128xi32>, i32 -> vector<8x128xi32>
    %555 = arith.addi %544, %554 : vector<8x128xi32>
    %c51_i32 = arith.constant 51 : i32
    %556 = tpu.dynamic_rotate %2 by %c51_i32 dim 1 : vector<8x128xf32>, i32 -> vector<8x128xf32>
    %c51_i32_54 = arith.constant 51 : i32
    %557 = tpu.dynamic_rotate %3 by %c51_i32_54 dim 1 : vector<8x128xi32>, i32 -> vector<8x128xi32>
    %558 = arith.cmpf ogt, %556, %2 : vector<8x128xf32>
    %559 = arith.cmpf oeq, %556, %2 : vector<8x128xf32>
    %560 = arith.cmpi slt, %557, %3 : vector<8x128xi32>
    %561 = arith.andi %559, %560 : vector<8x128xi1>
    %562 = arith.ori %558, %561 : vector<8x128xi1>
    %563 = arith.extui %562 : vector<8x128xi1> to vector<8x128xi32>
    %564 = arith.addi %553, %563 : vector<8x128xi32>
    %c77_i32 = arith.constant 77 : i32
    %565 = tpu.dynamic_rotate %563 by %c77_i32 dim 1 : vector<8x128xi32>, i32 -> vector<8x128xi32>
    %566 = arith.addi %555, %565 : vector<8x128xi32>
    %c52_i32 = arith.constant 52 : i32
    %567 = tpu.dynamic_rotate %2 by %c52_i32 dim 1 : vector<8x128xf32>, i32 -> vector<8x128xf32>
    %c52_i32_55 = arith.constant 52 : i32
    %568 = tpu.dynamic_rotate %3 by %c52_i32_55 dim 1 : vector<8x128xi32>, i32 -> vector<8x128xi32>
    %569 = arith.cmpf ogt, %567, %2 : vector<8x128xf32>
    %570 = arith.cmpf oeq, %567, %2 : vector<8x128xf32>
    %571 = arith.cmpi slt, %568, %3 : vector<8x128xi32>
    %572 = arith.andi %570, %571 : vector<8x128xi1>
    %573 = arith.ori %569, %572 : vector<8x128xi1>
    %574 = arith.extui %573 : vector<8x128xi1> to vector<8x128xi32>
    %575 = arith.addi %564, %574 : vector<8x128xi32>
    %c76_i32 = arith.constant 76 : i32
    %576 = tpu.dynamic_rotate %574 by %c76_i32 dim 1 : vector<8x128xi32>, i32 -> vector<8x128xi32>
    %577 = arith.addi %566, %576 : vector<8x128xi32>
    %c53_i32 = arith.constant 53 : i32
    %578 = tpu.dynamic_rotate %2 by %c53_i32 dim 1 : vector<8x128xf32>, i32 -> vector<8x128xf32>
    %c53_i32_56 = arith.constant 53 : i32
    %579 = tpu.dynamic_rotate %3 by %c53_i32_56 dim 1 : vector<8x128xi32>, i32 -> vector<8x128xi32>
    %580 = arith.cmpf ogt, %578, %2 : vector<8x128xf32>
    %581 = arith.cmpf oeq, %578, %2 : vector<8x128xf32>
    %582 = arith.cmpi slt, %579, %3 : vector<8x128xi32>
    %583 = arith.andi %581, %582 : vector<8x128xi1>
    %584 = arith.ori %580, %583 : vector<8x128xi1>
    %585 = arith.extui %584 : vector<8x128xi1> to vector<8x128xi32>
    %586 = arith.addi %575, %585 : vector<8x128xi32>
    %c75_i32 = arith.constant 75 : i32
    %587 = tpu.dynamic_rotate %585 by %c75_i32 dim 1 : vector<8x128xi32>, i32 -> vector<8x128xi32>
    %588 = arith.addi %577, %587 : vector<8x128xi32>
    %c54_i32 = arith.constant 54 : i32
    %589 = tpu.dynamic_rotate %2 by %c54_i32 dim 1 : vector<8x128xf32>, i32 -> vector<8x128xf32>
    %c54_i32_57 = arith.constant 54 : i32
    %590 = tpu.dynamic_rotate %3 by %c54_i32_57 dim 1 : vector<8x128xi32>, i32 -> vector<8x128xi32>
    %591 = arith.cmpf ogt, %589, %2 : vector<8x128xf32>
    %592 = arith.cmpf oeq, %589, %2 : vector<8x128xf32>
    %593 = arith.cmpi slt, %590, %3 : vector<8x128xi32>
    %594 = arith.andi %592, %593 : vector<8x128xi1>
    %595 = arith.ori %591, %594 : vector<8x128xi1>
    %596 = arith.extui %595 : vector<8x128xi1> to vector<8x128xi32>
    %597 = arith.addi %586, %596 : vector<8x128xi32>
    %c74_i32 = arith.constant 74 : i32
    %598 = tpu.dynamic_rotate %596 by %c74_i32 dim 1 : vector<8x128xi32>, i32 -> vector<8x128xi32>
    %599 = arith.addi %588, %598 : vector<8x128xi32>
    %c55_i32 = arith.constant 55 : i32
    %600 = tpu.dynamic_rotate %2 by %c55_i32 dim 1 : vector<8x128xf32>, i32 -> vector<8x128xf32>
    %c55_i32_58 = arith.constant 55 : i32
    %601 = tpu.dynamic_rotate %3 by %c55_i32_58 dim 1 : vector<8x128xi32>, i32 -> vector<8x128xi32>
    %602 = arith.cmpf ogt, %600, %2 : vector<8x128xf32>
    %603 = arith.cmpf oeq, %600, %2 : vector<8x128xf32>
    %604 = arith.cmpi slt, %601, %3 : vector<8x128xi32>
    %605 = arith.andi %603, %604 : vector<8x128xi1>
    %606 = arith.ori %602, %605 : vector<8x128xi1>
    %607 = arith.extui %606 : vector<8x128xi1> to vector<8x128xi32>
    %608 = arith.addi %597, %607 : vector<8x128xi32>
    %c73_i32 = arith.constant 73 : i32
    %609 = tpu.dynamic_rotate %607 by %c73_i32 dim 1 : vector<8x128xi32>, i32 -> vector<8x128xi32>
    %610 = arith.addi %599, %609 : vector<8x128xi32>
    %c56_i32 = arith.constant 56 : i32
    %611 = tpu.dynamic_rotate %2 by %c56_i32 dim 1 : vector<8x128xf32>, i32 -> vector<8x128xf32>
    %c56_i32_59 = arith.constant 56 : i32
    %612 = tpu.dynamic_rotate %3 by %c56_i32_59 dim 1 : vector<8x128xi32>, i32 -> vector<8x128xi32>
    %613 = arith.cmpf ogt, %611, %2 : vector<8x128xf32>
    %614 = arith.cmpf oeq, %611, %2 : vector<8x128xf32>
    %615 = arith.cmpi slt, %612, %3 : vector<8x128xi32>
    %616 = arith.andi %614, %615 : vector<8x128xi1>
    %617 = arith.ori %613, %616 : vector<8x128xi1>
    %618 = arith.extui %617 : vector<8x128xi1> to vector<8x128xi32>
    %619 = arith.addi %608, %618 : vector<8x128xi32>
    %c72_i32 = arith.constant 72 : i32
    %620 = tpu.dynamic_rotate %618 by %c72_i32 dim 1 : vector<8x128xi32>, i32 -> vector<8x128xi32>
    %621 = arith.addi %610, %620 : vector<8x128xi32>
    %c57_i32 = arith.constant 57 : i32
    %622 = tpu.dynamic_rotate %2 by %c57_i32 dim 1 : vector<8x128xf32>, i32 -> vector<8x128xf32>
    %c57_i32_60 = arith.constant 57 : i32
    %623 = tpu.dynamic_rotate %3 by %c57_i32_60 dim 1 : vector<8x128xi32>, i32 -> vector<8x128xi32>
    %624 = arith.cmpf ogt, %622, %2 : vector<8x128xf32>
    %625 = arith.cmpf oeq, %622, %2 : vector<8x128xf32>
    %626 = arith.cmpi slt, %623, %3 : vector<8x128xi32>
    %627 = arith.andi %625, %626 : vector<8x128xi1>
    %628 = arith.ori %624, %627 : vector<8x128xi1>
    %629 = arith.extui %628 : vector<8x128xi1> to vector<8x128xi32>
    %630 = arith.addi %619, %629 : vector<8x128xi32>
    %c71_i32 = arith.constant 71 : i32
    %631 = tpu.dynamic_rotate %629 by %c71_i32 dim 1 : vector<8x128xi32>, i32 -> vector<8x128xi32>
    %632 = arith.addi %621, %631 : vector<8x128xi32>
    %c58_i32 = arith.constant 58 : i32
    %633 = tpu.dynamic_rotate %2 by %c58_i32 dim 1 : vector<8x128xf32>, i32 -> vector<8x128xf32>
    %c58_i32_61 = arith.constant 58 : i32
    %634 = tpu.dynamic_rotate %3 by %c58_i32_61 dim 1 : vector<8x128xi32>, i32 -> vector<8x128xi32>
    %635 = arith.cmpf ogt, %633, %2 : vector<8x128xf32>
    %636 = arith.cmpf oeq, %633, %2 : vector<8x128xf32>
    %637 = arith.cmpi slt, %634, %3 : vector<8x128xi32>
    %638 = arith.andi %636, %637 : vector<8x128xi1>
    %639 = arith.ori %635, %638 : vector<8x128xi1>
    %640 = arith.extui %639 : vector<8x128xi1> to vector<8x128xi32>
    %641 = arith.addi %630, %640 : vector<8x128xi32>
    %c70_i32 = arith.constant 70 : i32
    %642 = tpu.dynamic_rotate %640 by %c70_i32 dim 1 : vector<8x128xi32>, i32 -> vector<8x128xi32>
    %643 = arith.addi %632, %642 : vector<8x128xi32>
    %c59_i32 = arith.constant 59 : i32
    %644 = tpu.dynamic_rotate %2 by %c59_i32 dim 1 : vector<8x128xf32>, i32 -> vector<8x128xf32>
    %c59_i32_62 = arith.constant 59 : i32
    %645 = tpu.dynamic_rotate %3 by %c59_i32_62 dim 1 : vector<8x128xi32>, i32 -> vector<8x128xi32>
    %646 = arith.cmpf ogt, %644, %2 : vector<8x128xf32>
    %647 = arith.cmpf oeq, %644, %2 : vector<8x128xf32>
    %648 = arith.cmpi slt, %645, %3 : vector<8x128xi32>
    %649 = arith.andi %647, %648 : vector<8x128xi1>
    %650 = arith.ori %646, %649 : vector<8x128xi1>
    %651 = arith.extui %650 : vector<8x128xi1> to vector<8x128xi32>
    %652 = arith.addi %641, %651 : vector<8x128xi32>
    %c69_i32 = arith.constant 69 : i32
    %653 = tpu.dynamic_rotate %651 by %c69_i32 dim 1 : vector<8x128xi32>, i32 -> vector<8x128xi32>
    %654 = arith.addi %643, %653 : vector<8x128xi32>
    %c60_i32 = arith.constant 60 : i32
    %655 = tpu.dynamic_rotate %2 by %c60_i32 dim 1 : vector<8x128xf32>, i32 -> vector<8x128xf32>
    %c60_i32_63 = arith.constant 60 : i32
    %656 = tpu.dynamic_rotate %3 by %c60_i32_63 dim 1 : vector<8x128xi32>, i32 -> vector<8x128xi32>
    %657 = arith.cmpf ogt, %655, %2 : vector<8x128xf32>
    %658 = arith.cmpf oeq, %655, %2 : vector<8x128xf32>
    %659 = arith.cmpi slt, %656, %3 : vector<8x128xi32>
    %660 = arith.andi %658, %659 : vector<8x128xi1>
    %661 = arith.ori %657, %660 : vector<8x128xi1>
    %662 = arith.extui %661 : vector<8x128xi1> to vector<8x128xi32>
    %663 = arith.addi %652, %662 : vector<8x128xi32>
    %c68_i32 = arith.constant 68 : i32
    %664 = tpu.dynamic_rotate %662 by %c68_i32 dim 1 : vector<8x128xi32>, i32 -> vector<8x128xi32>
    %665 = arith.addi %654, %664 : vector<8x128xi32>
    %c61_i32 = arith.constant 61 : i32
    %666 = tpu.dynamic_rotate %2 by %c61_i32 dim 1 : vector<8x128xf32>, i32 -> vector<8x128xf32>
    %c61_i32_64 = arith.constant 61 : i32
    %667 = tpu.dynamic_rotate %3 by %c61_i32_64 dim 1 : vector<8x128xi32>, i32 -> vector<8x128xi32>
    %668 = arith.cmpf ogt, %666, %2 : vector<8x128xf32>
    %669 = arith.cmpf oeq, %666, %2 : vector<8x128xf32>
    %670 = arith.cmpi slt, %667, %3 : vector<8x128xi32>
    %671 = arith.andi %669, %670 : vector<8x128xi1>
    %672 = arith.ori %668, %671 : vector<8x128xi1>
    %673 = arith.extui %672 : vector<8x128xi1> to vector<8x128xi32>
    %674 = arith.addi %663, %673 : vector<8x128xi32>
    %c67_i32 = arith.constant 67 : i32
    %675 = tpu.dynamic_rotate %673 by %c67_i32 dim 1 : vector<8x128xi32>, i32 -> vector<8x128xi32>
    %676 = arith.addi %665, %675 : vector<8x128xi32>
    %c62_i32 = arith.constant 62 : i32
    %677 = tpu.dynamic_rotate %2 by %c62_i32 dim 1 : vector<8x128xf32>, i32 -> vector<8x128xf32>
    %c62_i32_65 = arith.constant 62 : i32
    %678 = tpu.dynamic_rotate %3 by %c62_i32_65 dim 1 : vector<8x128xi32>, i32 -> vector<8x128xi32>
    %679 = arith.cmpf ogt, %677, %2 : vector<8x128xf32>
    %680 = arith.cmpf oeq, %677, %2 : vector<8x128xf32>
    %681 = arith.cmpi slt, %678, %3 : vector<8x128xi32>
    %682 = arith.andi %680, %681 : vector<8x128xi1>
    %683 = arith.ori %679, %682 : vector<8x128xi1>
    %684 = arith.extui %683 : vector<8x128xi1> to vector<8x128xi32>
    %685 = arith.addi %674, %684 : vector<8x128xi32>
    %c66_i32 = arith.constant 66 : i32
    %686 = tpu.dynamic_rotate %684 by %c66_i32 dim 1 : vector<8x128xi32>, i32 -> vector<8x128xi32>
    %687 = arith.addi %676, %686 : vector<8x128xi32>
    %c63_i32 = arith.constant 63 : i32
    %688 = tpu.dynamic_rotate %2 by %c63_i32 dim 1 : vector<8x128xf32>, i32 -> vector<8x128xf32>
    %c63_i32_66 = arith.constant 63 : i32
    %689 = tpu.dynamic_rotate %3 by %c63_i32_66 dim 1 : vector<8x128xi32>, i32 -> vector<8x128xi32>
    %690 = arith.cmpf ogt, %688, %2 : vector<8x128xf32>
    %691 = arith.cmpf oeq, %688, %2 : vector<8x128xf32>
    %692 = arith.cmpi slt, %689, %3 : vector<8x128xi32>
    %693 = arith.andi %691, %692 : vector<8x128xi1>
    %694 = arith.ori %690, %693 : vector<8x128xi1>
    %695 = arith.extui %694 : vector<8x128xi1> to vector<8x128xi32>
    %696 = arith.addi %685, %695 : vector<8x128xi32>
    %c65_i32 = arith.constant 65 : i32
    %697 = tpu.dynamic_rotate %695 by %c65_i32 dim 1 : vector<8x128xi32>, i32 -> vector<8x128xi32>
    %698 = arith.addi %687, %697 : vector<8x128xi32>
    %c64_i32 = arith.constant 64 : i32
    %699 = tpu.dynamic_rotate %2 by %c64_i32 dim 1 : vector<8x128xf32>, i32 -> vector<8x128xf32>
    %c64_i32_67 = arith.constant 64 : i32
    %700 = tpu.dynamic_rotate %3 by %c64_i32_67 dim 1 : vector<8x128xi32>, i32 -> vector<8x128xi32>
    %701 = arith.cmpf ogt, %699, %2 : vector<8x128xf32>
    %702 = arith.cmpf oeq, %699, %2 : vector<8x128xf32>
    %703 = arith.cmpi slt, %700, %3 : vector<8x128xi32>
    %704 = arith.andi %702, %703 : vector<8x128xi1>
    %705 = arith.ori %701, %704 : vector<8x128xi1>
    %706 = arith.extui %705 : vector<8x128xi1> to vector<8x128xi32>
    %707 = arith.addi %696, %706 : vector<8x128xi32>
    %708 = arith.subi %707, %698 : vector<8x128xi32>
    %c-31_i32 = arith.constant -31 : i32
    %709 = vector.broadcast %c-31_i32 : i32 to vector<8x128xi32>
    %710 = arith.cmpi slt, %708, %709 : vector<8x128xi32>
    %711 = arith.extui %710 : vector<8x128xi1> to vector<8x128xi32>
    %712 = arith.sitofp %711 : vector<8x128xi32> to vector<8x128xf32>
    %c0_68 = arith.constant 0 : index
    %c0_69 = arith.constant 0 : index
    %713 = vector.load %arg3[%c0_68, %c0_69] : memref<8x128xf32, #tpu.memory_space<vmem>>, vector<8x128xf32>
    tpu.vector_store %arg3[%c0_68, %c0_69], %712 {strides = array<i32>} : memref<8x128xf32, #tpu.memory_space<vmem>>, vector<8x128xf32>,
    return
  }
  func.func @transform_0(%arg0: i32) -> (i32, i32) {
    %c0_i32 = arith.constant 0 : i32
    %c0_i32_0 = arith.constant 0 : i32
    return %arg0, %c0_i32 : i32, i32
  }
  func.func @transform_1(%arg0: i32) -> (i32, i32) {
    %c0_i32 = arith.constant 0 : i32
    %c0_i32_0 = arith.constant 0 : i32
    %c0_i32_1 = arith.constant 0 : i32
    return %c0_i32, %c0_i32_0 : i32, i32
  }
  func.func @transform_2(%arg0: i32) -> (i32, i32) {
    %c0_i32 = arith.constant 0 : i32
    %c0_i32_0 = arith.constant 0 : i32
    return %arg0, %c0_i32 : i32, i32
  }
}

</mosaic_0001>

<llo_original>
// kernel: tpu_custom_call.1
$region0: #{tpu_custom_call.1}
  #allocation0 [shape = 'u32[]', space=smem, size = 0x4, offset = 0x4, fixed_abs, tag = 'smem constant byte address 0x4 - core index']
  #allocation1 [shape = 'u32[72,128]{1,0:T(1,128)}', space=vmem, size = 0x9000, scoped, tag = 'internal scratch']
  %s0 = inlined_call_operand.hbm [shape: f32[32,128], index: 0, kind: input, shape index: {}]
  %s1 = inlined_call_operand.hbm [shape: f32[128,128], index: 1, kind: input, shape index: {}]
  %s2 = inlined_call_operand.hbm [shape: f32[32,128], index: 2, kind: output, shape index: {}]
  %s3 = sld [smem:[#allocation0]]
  $region49: #{tpu_custom_call.1} parent=0
    _
  %s5 = ssub.s32 1, %s3
  %s6 = scalar_select 0, %s5, %s3
  $region1: #{tpu_custom_call.1} parent=0
    #allocation2 [shape = 'u8[8192]{0}', space=vmem, size = 0x2000, scoped, tag = 'input window, operand 0']
    #allocation3 [shape = 's32[2]{0}', space=sflag, size = 0x8, scoped, tag = 'scoped memory for tpu_custom_call.1']
    #allocation4 [shape = 's32[2]{0}', space=sflag, size = 0x8, scoped, tag = 'scoped memory for tpu_custom_call.1']
    #allocation5 [shape = 'u8[65536]{0}', space=vmem, size = 0x10000, scoped, tag = 'input window, operand 1, single buffered']
    #allocation6 [shape = 's32[1]{0}', space=sflag, size = 0x4, scoped, tag = 'scoped memory for tpu_custom_call.1']
    #allocation7 [shape = 'u8[8192]{0}', space=vmem, size = 0x2000, scoped, tag = 'output window, operand 0']
    %7 = vsyncpa [#allocation3], 0
    %s8 = scalar_lea.sflag [#allocation3], 1
    %9 = vsyncpa %s8, 0
    %10 = vsyncpa [#allocation6], 0
    %11 = vsyncpa [#allocation4], 0
    %s12 = scalar_lea.sflag [#allocation4], 1
    %13 = vsyncpa %s12, 0
    loop: start=0, step=1, limit=6
    $region2: #{tpu_custom_call.1} parent=1 // loop_pre_header
      _
    $region3: #{tpu_custom_call.1} parent=1 // loop_header
      %s15 = sphi 0, %s19
      %p16 = scmp.ge.s32.totalorder %s15, 6
      %s25 = sphi 0, %s27
      %s28 = sphi 0, %s25
      %s29 = sphi 0, %s28
      %s45 = sphi 0, %s29
      %s49 = sphi 0, %s49
      %s51 = sphi 0, %s49
      %s52 = sphi 0, %s51
      %s66 = sphi 0, %s52
      %s72 = sphi 0, %s74
      %s75 = sphi 0, %s72
      %s76 = sphi 0, %s75
      %s92 = sphi 0, %s76
    $region4: #{tpu_custom_call.1} parent=1 // loop_header_branch
      %18 = sbr.rel (%p16) target = $region8
    $region5: #{tpu_custom_call.1} parent=1 // loop_body
      %s20 = ssub.s32 %s15, 1
      %s21 = ssub.s32 %s15, 2
      %s22 = sadd.s32 %s15, 1
      %s23 = ssub.s32 %s15, %s22
      %p24 = scmp.eq.s32.totalorder %s23, 0
      %s26 = sadd.s32 %s25, 1
      %s27 = scalar_select %p24, %s25, %s26
      %p30 = pneg %p24
      %p31 = scmp.eq.s32.totalorder %s15, 3
      %p32 = por %p30, %p31
      %p33 = scmp.ne.s32.totalorder %s25, %s28
      %p34 = scmp.eq.s32.totalorder %s15, 0
      %p35 = por %p33, %p34
      %p36 = scmp.ne.s32.totalorder %s25, %s28
      %p37 = scmp.eq.s32.totalorder %s20, 3
      %p38 = por %p36, %p37
      %p39 = scmp.ne.s32.totalorder %s28, %s29
      %p40 = scmp.eq.s32.totalorder %s20, 0
      %p41 = por %p39, %p40
      %p42 = scmp.ne.s32.totalorder %s28, %s29
      %p43 = scmp.eq.s32.totalorder %s21, 3
      %p44 = por %p42, %p43
      %p46 = scmp.ne.s32.totalorder %s29, %s45
      %p47 = scmp.eq.s32.totalorder %s21, 0
      %p48 = por %p46, %p47
      %s50 = sadd.s32 %s49, 1
      %p53 = scmp.eq.s32.totalorder %s15, 3
      %p54 = scmp.ne.s32.totalorder %s49, %s51
      %p55 = scmp.eq.s32.totalorder %s15, 0
      %p56 = por %p54, %p55
      %p57 = scmp.ne.s32.totalorder %s49, %s51
      %p58 = scmp.eq.s32.totalorder %s20, 3
      %p59 = por %p57, %p58
      %p60 = scmp.ne.s32.totalorder %s51, %s52
      %p61 = scmp.eq.s32.totalorder %s20, 0
      %p62 = por %p60, %p61
      %p63 = scmp.ne.s32.totalorder %s51, %s52
      %p64 = scmp.eq.s32.totalorder %s21, 3
      %p65 = por %p63, %p64
      %p67 = scmp.ne.s32.totalorder %s52, %s66
      %p68 = scmp.eq.s32.totalorder %s21, 0
      %p69 = por %p67, %p68
      %s70 = ssub.s32 %s15, %s22
      %p71 = scmp.eq.s32.totalorder %s70, 0
      %s73 = sadd.s32 %s72, 1
      %s74 = scalar_select %p71, %s72, %s73
      %p77 = pneg %p71
      %p78 = scmp.eq.s32.totalorder %s15, 3
      %p79 = por %p77, %p78
      %p80 = scmp.ne.s32.totalorder %s72, %s75
      %p81 = scmp.eq.s32.totalorder %s15, 0
      %p82 = por %p80, %p81
      %p83 = scmp.ne.s32.totalorder %s72, %s75
      %p84 = scmp.eq.s32.totalorder %s20, 3
      %p85 = por %p83, %p84
      %p86 = scmp.ne.s32.totalorder %s75, %s76
      %p87 = scmp.eq.s32.totalorder %s20, 0
      %p88 = por %p86, %p87
      %p89 = scmp.ne.s32.totalorder %s75, %s76
      %p90 = scmp.eq.s32.totalorder %s21, 3
      %p91 = por %p89, %p90
      %p93 = scmp.ne.s32.totalorder %s76, %s92
      %p94 = scmp.eq.s32.totalorder %s21, 0
      %p95 = por %p93, %p94
      %p96 = scmp.le.s32.totalorder 1, %s15
      %p97 = scmp.lt.s32.totalorder %s15, 5
      %p98 = pnand %p96, %p97
      %p99 = pneg %p98
      // Predicated region
      $region9: #{tpu_custom_call.1} parent=5 // pred_check
        _
      $region10: #{tpu_custom_call.1} parent=5 // pred_check_branch
        %101 = sbr.rel (%p98) target = $region12
      $region11: #{tpu_custom_call.1} parent=5 // pred_region
        %s102 = ssub.s32 %s15, 1
        // Predicated region
        $region13: #{tpu_custom_call.1} parent=11 // pred_check
          %p103 = pneg %p62
        $region14: #{tpu_custom_call.1} parent=11 // pred_check_branch
          %105 = sbr.rel (%p103) target = $region16
        $region15: #{tpu_custom_call.1} parent=11 // pred_region
          %107 = vsyncadd [#allocation6], 0
          %s108 = sshll.u32 %s1, 4
          %s109 = int_to_ptr.hbm [resolvable:$true] %s108
          %s110 = sshll.u32 [#allocation5], 4
          %s111 = int_to_ptr.vmem [resolvable:$true] %s110
          %116 = dma.hbm_to_vmem [thread:$0]  %s109, 2048, %s111, [#allocation6], 128, 128, 8
        $region16: #{tpu_custom_call.1} parent=11 // pred_fallthru
          _
      $region12: #{tpu_custom_call.1} parent=5 // pred_fallthru
        _
      %p117 = scmp.lt.s32.totalorder %s15, 4
      // Predicated region
      $region17: #{tpu_custom_call.1} parent=5 // pred_check
        %p118 = pneg %p117
      $region18: #{tpu_custom_call.1} parent=5 // pred_check_branch
        %120 = sbr.rel (%p118) target = $region20
      $region19: #{tpu_custom_call.1} parent=5 // pred_region
        // Predicated region
        $region21: #{tpu_custom_call.1} parent=19 // pred_check
          %p121 = pneg %p35
        $region22: #{tpu_custom_call.1} parent=19 // pred_check_branch
          %123 = sbr.rel (%p121) target = $region24
        $region23: #{tpu_custom_call.1} parent=19 // pred_region
          %s124 = sand.u32 %s25, 1
          %s125 = scalar_lea.sflag [#allocation3], %s124
          %s126 = sand.u32 %s25, 1
          %s127 = smul.addr %s126, 8
          %s128 = scalar_lea.vmem [#allocation2], %s127
          %130 = vsyncadd %s125, 0
          %s131 = smul.addr %s15, 8
          %s132 = scalar_lea.hbm %s0, %s131
          %s134 = sshll.u32 %s132, 4
          %s135 = int_to_ptr.hbm [resolvable:$true] %s134
          %s136 = sshll.u32 %s128, 4
          %s137 = int_to_ptr.vmem [resolvable:$true] %s136
          %139 = dma.hbm_to_vmem [thread:$0]  %s135, 128, %s137, %s125
        $region24: #{tpu_custom_call.1} parent=19 // pred_fallthru
          _
      $region20: #{tpu_custom_call.1} parent=5 // pred_fallthru
        _
      %p140 = scmp.le.s32.totalorder 1, %s15
      %p141 = scmp.lt.s32.totalorder %s15, 5
      %p142 = pnand %p140, %p141
      %p143 = pneg %p142
      // Predicated region
      $region25: #{tpu_custom_call.1} parent=5 // pred_check
        _
      $region26: #{tpu_custom_call.1} parent=5 // pred_check_branch
        %145 = sbr.rel (%p142) target = $region28
      $region27: #{tpu_custom_call.1} parent=5 // pred_region
        %s146 = ssub.s32 %s15, 1
        %s147 = sand.u32 %s28, 1
        %s148 = scalar_lea.sflag [#allocation3], %s147
        %s149 = sand.u32 %s28, 1
        %s150 = smul.addr %s149, 8
        %s151 = scalar_lea.vmem [#allocation2], %s150
        // Predicated region
        $region29: #{tpu_custom_call.1} parent=27 // pred_check
          %p152 = pneg %p41
        $region30: #{tpu_custom_call.1} parent=27 // pred_check_branch
          %154 = sbr.rel (%p152) target = $region32
        $region31: #{tpu_custom_call.1} parent=27 // pred_region
          %156 = dma.done %s148, 128
        $region32: #{tpu_custom_call.1} parent=27 // pred_fallthru
          _
        // Predicated region
        $region33: #{tpu_custom_call.1} parent=27 // pred_check
          %p157 = pneg %p62
        $region34: #{tpu_custom_call.1} parent=27 // pred_check_branch
          %159 = sbr.rel (%p157) target = $region36
        $region35: #{tpu_custom_call.1} parent=27 // pred_region
          %161 = dma.done [#allocation6], 2048
        $region36: #{tpu_custom_call.1} parent=27 // pred_fallthru
          _
        %s162 = sand.u32 %s28, 1
        %s163 = scalar_lea.sflag [#allocation3], %s162
        %s164 = sand.u32 %s28, 1
        %s165 = smul.addr %s164, 8
        %s166 = scalar_lea.vmem [#allocation2], %s165
        %p167 = pneg %p41
        %p168 = pneg %p38
        %p169 = pneg %p62
        %p170 = pneg %p59
        %p171 = pneg %p88
        %p172 = pneg %p85
        %s173 = sand.u32 %s75, 1
        %s174 = scalar_lea.sflag [#allocation4], %s173
        %s175 = sand.u32 %s75, 1
        %s176 = smul.addr %s175, 8
        %s177 = scalar_lea.vmem [#allocation7], %s176
        %v178 = vld [vmem:[%s151] sm:$0xff]
        %v179 = vld [vmem:[#allocation5] sm:$0xff]
        %v180 = vld [vmem:[#allocation5 + $0x8] sm:$0xff]
        %v181 = vld [vmem:[#allocation5 + $0x10] sm:$0xff]
        %v182 = vld [vmem:[#allocation5 + $0x18] sm:$0xff]
        %v183 = vld [vmem:[#allocation5 + $0x20] sm:$0xff]
        %v184 = vld [vmem:[#allocation5 + $0x28] sm:$0xff]
        %v185 = vld [vmem:[#allocation5 + $0x30] sm:$0xff]
        %v186 = vld [vmem:[#allocation5 + $0x38] sm:$0xff]
        %v187 = vld [vmem:[#allocation5 + $0x40] sm:$0xff]
        %v188 = vld [vmem:[#allocation5 + $0x48] sm:$0xff]
        %v189 = vld [vmem:[#allocation5 + $0x50] sm:$0xff]
        %v190 = vld [vmem:[#allocation5 + $0x58] sm:$0xff]
        %v191 = vld [vmem:[#allocation5 + $0x60] sm:$0xff]
        %v192 = vld [vmem:[#allocation5 + $0x68] sm:$0xff]
        %v193 = vld [vmem:[#allocation5 + $0x70] sm:$0xff]
        %v194 = vld [vmem:[#allocation5 + $0x78] sm:$0xff]
        %195 = vmatpush.xpose.msra.mxu0 %v194
        %196 = vmatpush.xpose.msra.mxu0 %v193
        %197 = vmatpush.xpose.msra.mxu0 %v192
        %198 = vmatpush.xpose.msra.mxu0 %v191
        %199 = vmatpush.xpose.msra.mxu0 %v190
        %200 = vmatpush.xpose.msra.mxu0 %v189
        %201 = vmatpush.xpose.msra.mxu0 %v188
        %202 = vmatpush.xpose.msra.mxu0 %v187
        %203 = vmatpush.xpose.msra.mxu0 %v186
        %204 = vmatpush.xpose.msra.mxu0 %v185
        %205 = vmatpush.xpose.msra.mxu0 %v184
        %206 = vmatpush.xpose.msra.mxu0 %v183
        %207 = vmatpush.xpose.msra.mxu0 %v182
        %208 = vmatpush.xpose.msra.mxu0 %v181
        %209 = vmatpush.xpose.msra.mxu0 %v180
        %210 = vmatpush.xpose.msra.mxu0 %v179
        %211 = vmatmul.f32.gmra.mxu0 %v178
        %v212 = vpop.f32.mrf.mxu0
        %v213 = vadd.f32 0.0, %v212
        %214 = vdwg.mxu0
        %v215 = vlaneseq
        %v216 = vand.u32 %v215, 127
        %217 = vrot.lane.b32.xlu0 %v213, 1
        %v218 = vpop.permute.xlu0 %217
        %219 = vrot.lane.b32.xlu0 %v216, 1
        %v220 = vpop.permute.xlu0 %219
        %vm221 = vcmp.gt.f32.partialorder %v218, %v213
        %vm222 = vcmp.eq.f32.partialorder %v218, %v213
        %vm223 = vcmp.lt.s32.totalorder %v220, %v216
        %vm224 = vmand %vm222, %vm223
        %vm225 = vmor %vm221, %vm224
        %v226 = vsel %vm225, 1, 0
        %227 = vrot.lane.b32.xlu0 %v226, 127
        %v228 = vpop.permute.xlu0 %227
        %229 = vrot.lane.b32.xlu0 %v213, 2
        %v230 = vpop.permute.xlu0 %229
        %231 = vrot.lane.b32.xlu0 %v216, 2
        %v232 = vpop.permute.xlu0 %231
        %vm233 = vcmp.gt.f32.partialorder %v230, %v213
        %vm234 = vcmp.eq.f32.partialorder %v230, %v213
        %vm235 = vcmp.lt.s32.totalorder %v232, %v216
        %vm236 = vmand %vm234, %vm235
        %vm237 = vmor %vm233, %vm236
        %v238 = vsel %vm237, 1, 0
        %v239 = vadd.s32 %v226, %v238
        %240 = vrot.lane.b32.xlu0 %v238, 126
        %v241 = vpop.permute.xlu0 %240
        %v242 = vadd.s32 %v228, %v241
        %243 = vrot.lane.b32.xlu0 %v213, 3
        %v244 = vpop.permute.xlu0 %243
        %245 = vrot.lane.b32.xlu0 %v216, 3
        %v246 = vpop.permute.xlu0 %245
        %vm247 = vcmp.gt.f32.partialorder %v244, %v213
        %vm248 = vcmp.eq.f32.partialorder %v244, %v213
        %vm249 = vcmp.lt.s32.totalorder %v246, %v216
        %vm250 = vmand %vm248, %vm249
        %vm251 = vmor %vm247, %vm250
        %v252 = vsel %vm251, 1, 0
        %v253 = vadd.s32 %v239, %v252
        %254 = vrot.lane.b32.xlu0 %v252, 125
        %v255 = vpop.permute.xlu0 %254
        %v256 = vadd.s32 %v242, %v255
        %257 = vrot.lane.b32.xlu0 %v213, 4
        %v258 = vpop.permute.xlu0 %257
        %259 = vrot.lane.b32.xlu0 %v216, 4
        %v260 = vpop.permute.xlu0 %259
        %vm261 = vcmp.gt.f32.partialorder %v258, %v213
        %vm262 = vcmp.eq.f32.partialorder %v258, %v213
        %vm263 = vcmp.lt.s32.totalorder %v260, %v216
        %vm264 = vmand %vm262, %vm263
        %vm265 = vmor %vm261, %vm264
        %v266 = vsel %vm265, 1, 0
        %v267 = vadd.s32 %v253, %v266
        %268 = vrot.lane.b32.xlu0 %v266, 124
        %v269 = vpop.permute.xlu0 %268
        %v270 = vadd.s32 %v256, %v269
        %271 = vrot.lane.b32.xlu0 %v213, 5
        %v272 = vpop.permute.xlu0 %271
        %273 = vrot.lane.b32.xlu0 %v216, 5
        %v274 = vpop.permute.xlu0 %273
        %vm275 = vcmp.gt.f32.partialorder %v272, %v213
        %vm276 = vcmp.eq.f32.partialorder %v272, %v213
        %vm277 = vcmp.lt.s32.totalorder %v274, %v216
        %vm278 = vmand %vm276, %vm277
        %vm279 = vmor %vm275, %vm278
        %v280 = vsel %vm279, 1, 0
        %v281 = vadd.s32 %v267, %v280
        %282 = vrot.lane.b32.xlu0 %v280, 123
        %v283 = vpop.permute.xlu0 %282
        %v284 = vadd.s32 %v270, %v283
        %285 = vrot.lane.b32.xlu0 %v213, 6
        %v286 = vpop.permute.xlu0 %285
        %287 = vrot.lane.b32.xlu0 %v216, 6
        %v288 = vpop.permute.xlu0 %287
        %vm289 = vcmp.gt.f32.partialorder %v286, %v213
        %vm290 = vcmp.eq.f32.partialorder %v286, %v213
        %vm291 = vcmp.lt.s32.totalorder %v288, %v216
        %vm292 = vmand %vm290, %vm291
        %vm293 = vmor %vm289, %vm292
        %v294 = vsel %vm293, 1, 0
        %v295 = vadd.s32 %v281, %v294
        %296 = vrot.lane.b32.xlu0 %v294, 122
        %v297 = vpop.permute.xlu0 %296
        %v298 = vadd.s32 %v284, %v297
        %299 = vrot.lane.b32.xlu0 %v213, 7
        %v300 = vpop.permute.xlu0 %299
        %301 = vrot.lane.b32.xlu0 %v216, 7
        %v302 = vpop.permute.xlu0 %301
        %vm303 = vcmp.gt.f32.partialorder %v300, %v213
        %vm304 = vcmp.eq.f32.partialorder %v300, %v213
        %vm305 = vcmp.lt.s32.totalorder %v302, %v216
        %vm306 = vmand %vm304, %vm305
        %vm307 = vmor %vm303, %vm306
        %v308 = vsel %vm307, 1, 0
        %v309 = vadd.s32 %v295, %v308
        %310 = vrot.lane.b32.xlu0 %v308, 121
        %v311 = vpop.permute.xlu0 %310
        %v312 = vadd.s32 %v298, %v311
        %313 = vrot.lane.b32.xlu0 %v213, 8
        %v314 = vpop.permute.xlu0 %313
        %315 = vrot.lane.b32.xlu0 %v216, 8
        %v316 = vpop.permute.xlu0 %315
        %vm317 = vcmp.gt.f32.partialorder %v314, %v213
        %vm318 = vcmp.eq.f32.partialorder %v314, %v213
        %vm319 = vcmp.lt.s32.totalorder %v316, %v216
        %vm320 = vmand %vm318, %vm319
        %vm321 = vmor %vm317, %vm320
        %v322 = vsel %vm321, 1, 0
        %v323 = vadd.s32 %v309, %v322
        %324 = vrot.lane.b32.xlu0 %v322, 120
        %v325 = vpop.permute.xlu0 %324
        %v326 = vadd.s32 %v312, %v325
        %327 = vrot.lane.b32.xlu0 %v213, 9
        %v328 = vpop.permute.xlu0 %327
        %329 = vrot.lane.b32.xlu0 %v216, 9
        %v330 = vpop.permute.xlu0 %329
        %vm331 = vcmp.gt.f32.partialorder %v328, %v213
        %vm332 = vcmp.eq.f32.partialorder %v328, %v213
        %vm333 = vcmp.lt.s32.totalorder %v330, %v216
        %vm334 = vmand %vm332, %vm333
        %vm335 = vmor %vm331, %vm334
        %v336 = vsel %vm335, 1, 0
        %v337 = vadd.s32 %v323, %v336
        %338 = vrot.lane.b32.xlu0 %v336, 119
        %v339 = vpop.permute.xlu0 %338
        %v340 = vadd.s32 %v326, %v339
        %341 = vrot.lane.b32.xlu0 %v213, 10
        %v342 = vpop.permute.xlu0 %341
        %343 = vrot.lane.b32.xlu0 %v216, 10
        %v344 = vpop.permute.xlu0 %343
        %vm345 = vcmp.gt.f32.partialorder %v342, %v213
        %vm346 = vcmp.eq.f32.partialorder %v342, %v213
        %vm347 = vcmp.lt.s32.totalorder %v344, %v216
        %vm348 = vmand %vm346, %vm347
        %vm349 = vmor %vm345, %vm348
        %v350 = vsel %vm349, 1, 0
        %v351 = vadd.s32 %v337, %v350
        %352 = vrot.lane.b32.xlu0 %v350, 118
        %v353 = vpop.permute.xlu0 %352
        %v354 = vadd.s32 %v340, %v353
        %355 = vrot.lane.b32.xlu0 %v213, 11
        %v356 = vpop.permute.xlu0 %355
        %357 = vrot.lane.b32.xlu0 %v216, 11
        %v358 = vpop.permute.xlu0 %357
        %vm359 = vcmp.gt.f32.partialorder %v356, %v213
        %vm360 = vcmp.eq.f32.partialorder %v356, %v213
        %vm361 = vcmp.lt.s32.totalorder %v358, %v216
        %vm362 = vmand %vm360, %vm361
        %vm363 = vmor %vm359, %vm362
        %v364 = vsel %vm363, 1, 0
        %v365 = vadd.s32 %v351, %v364
        %366 = vrot.lane.b32.xlu0 %v364, 117
        %v367 = vpop.permute.xlu0 %366
        %v368 = vadd.s32 %v354, %v367
        %369 = vrot.lane.b32.xlu0 %v213, 12
        %v370 = vpop.permute.xlu0 %369
        %371 = vrot.lane.b32.xlu0 %v216, 12
        %v372 = vpop.permute.xlu0 %371
        %vm373 = vcmp.gt.f32.partialorder %v370, %v213
        %vm374 = vcmp.eq.f32.partialorder %v370, %v213
        %vm375 = vcmp.lt.s32.totalorder %v372, %v216
        %vm376 = vmand %vm374, %vm375
        %vm377 = vmor %vm373, %vm376
        %v378 = vsel %vm377, 1, 0
        %v379 = vadd.s32 %v365, %v378
        %380 = vrot.lane.b32.xlu0 %v378, 116
        %v381 = vpop.permute.xlu0 %380
        %v382 = vadd.s32 %v368, %v381
        %383 = vrot.lane.b32.xlu0 %v213, 13
        %v384 = vpop.permute.xlu0 %383
        %385 = vrot.lane.b32.xlu0 %v216, 13
        %v386 = vpop.permute.xlu0 %385
        %vm387 = vcmp.gt.f32.partialorder %v384, %v213
        %vm388 = vcmp.eq.f32.partialorder %v384, %v213
        %vm389 = vcmp.lt.s32.totalorder %v386, %v216
        %vm390 = vmand %vm388, %vm389
        %vm391 = vmor %vm387, %vm390
        %v392 = vsel %vm391, 1, 0
        %v393 = vadd.s32 %v379, %v392
        %394 = vrot.lane.b32.xlu0 %v392, 115
        %v395 = vpop.permute.xlu0 %394
        %v396 = vadd.s32 %v382, %v395
        %397 = vrot.lane.b32.xlu0 %v213, 14
        %v398 = vpop.permute.xlu0 %397
        %399 = vrot.lane.b32.xlu0 %v216, 14
        %v400 = vpop.permute.xlu0 %399
        %vm401 = vcmp.gt.f32.partialorder %v398, %v213
        %vm402 = vcmp.eq.f32.partialorder %v398, %v213
        %vm403 = vcmp.lt.s32.totalorder %v400, %v216
        %vm404 = vmand %vm402, %vm403
        %vm405 = vmor %vm401, %vm404
        %v406 = vsel %vm405, 1, 0
        %v407 = vadd.s32 %v393, %v406
        %408 = vrot.lane.b32.xlu0 %v406, 114
        %v409 = vpop.permute.xlu0 %408
        %v410 = vadd.s32 %v396, %v409
        %411 = vrot.lane.b32.xlu0 %v213, 15
        %v412 = vpop.permute.xlu0 %411
        %413 = vrot.lane.b32.xlu0 %v216, 15
        %v414 = vpop.permute.xlu0 %413
        %vm415 = vcmp.gt.f32.partialorder %v412, %v213
        %vm416 = vcmp.eq.f32.partialorder %v412, %v213
        %vm417 = vcmp.lt.s32.totalorder %v414, %v216
        %vm418 = vmand %vm416, %vm417
        %vm419 = vmor %vm415, %vm418
        %v420 = vsel %vm419, 1, 0
        %v421 = vadd.s32 %v407, %v420
        %422 = vrot.lane.b32.xlu0 %v420, 113
        %v423 = vpop.permute.xlu0 %422
        %v424 = vadd.s32 %v410, %v423
        %425 = vrot.lane.b32.xlu0 %v213, 16
        %v426 = vpop.permute.xlu0 %425
        %427 = vrot.lane.b32.xlu0 %v216, 16
        %v428 = vpop.permute.xlu0 %427
        %vm429 = vcmp.gt.f32.partialorder %v426, %v213
        %vm430 = vcmp.eq.f32.partialorder %v426, %v213
        %vm431 = vcmp.lt.s32.totalorder %v428, %v216
        %vm432 = vmand %vm430, %vm431
        %vm433 = vmor %vm429, %vm432
        %v434 = vsel %vm433, 1, 0
        %v435 = vadd.s32 %v421, %v434
        %436 = vrot.lane.b32.xlu0 %v434, 112
        %v437 = vpop.permute.xlu0 %436
        %v438 = vadd.s32 %v424, %v437
        %439 = vrot.lane.b32.xlu0 %v213, 17
        %v440 = vpop.permute.xlu0 %439
        %441 = vrot.lane.b32.xlu0 %v216, 17
        %v442 = vpop.permute.xlu0 %441
        %vm443 = vcmp.gt.f32.partialorder %v440, %v213
        %vm444 = vcmp.eq.f32.partialorder %v440, %v213
        %vm445 = vcmp.lt.s32.totalorder %v442, %v216
        %vm446 = vmand %vm444, %vm445
        %vm447 = vmor %vm443, %vm446
        %v448 = vsel %vm447, 1, 0
        %v449 = vadd.s32 %v435, %v448
        %450 = vrot.lane.b32.xlu0 %v448, 111
        %v451 = vpop.permute.xlu0 %450
        %v452 = vadd.s32 %v438, %v451
        %453 = vrot.lane.b32.xlu0 %v213, 18
        %v454 = vpop.permute.xlu0 %453
        %455 = vrot.lane.b32.xlu0 %v216, 18
        %v456 = vpop.permute.xlu0 %455
        %vm457 = vcmp.gt.f32.partialorder %v454, %v213
        %vm458 = vcmp.eq.f32.partialorder %v454, %v213
        %vm459 = vcmp.lt.s32.totalorder %v456, %v216
        %vm460 = vmand %vm458, %vm459
        %vm461 = vmor %vm457, %vm460
        %v462 = vsel %vm461, 1, 0
        %v463 = vadd.s32 %v449, %v462
        %464 = vrot.lane.b32.xlu0 %v462, 110
        %v465 = vpop.permute.xlu0 %464
        %v466 = vadd.s32 %v452, %v465
        %467 = vrot.lane.b32.xlu0 %v213, 19
        %v468 = vpop.permute.xlu0 %467
        %469 = vrot.lane.b32.xlu0 %v216, 19
        %v470 = vpop.permute.xlu0 %469
        %vm471 = vcmp.gt.f32.partialorder %v468, %v213
        %vm472 = vcmp.eq.f32.partialorder %v468, %v213
        %vm473 = vcmp.lt.s32.totalorder %v470, %v216
        %vm474 = vmand %vm472, %vm473
        %vm475 = vmor %vm471, %vm474
        %v476 = vsel %vm475, 1, 0
        %v477 = vadd.s32 %v463, %v476
        %478 = vrot.lane.b32.xlu0 %v476, 109
        %v479 = vpop.permute.xlu0 %478
        %v480 = vadd.s32 %v466, %v479
        %481 = vrot.lane.b32.xlu0 %v213, 20
        %v482 = vpop.permute.xlu0 %481
        %483 = vrot.lane.b32.xlu0 %v216, 20
        %v484 = vpop.permute.xlu0 %483
        %vm485 = vcmp.gt.f32.partialorder %v482, %v213
        %vm486 = vcmp.eq.f32.partialorder %v482, %v213
        %vm487 = vcmp.lt.s32.totalorder %v484, %v216
        %vm488 = vmand %vm486, %vm487
        %vm489 = vmor %vm485, %vm488
        %v490 = vsel %vm489, 1, 0
        %v491 = vadd.s32 %v477, %v490
        %492 = vrot.lane.b32.xlu0 %v490, 108
        %v493 = vpop.permute.xlu0 %492
        %v494 = vadd.s32 %v480, %v493
        %495 = vrot.lane.b32.xlu0 %v213, 21
        %v496 = vpop.permute.xlu0 %495
        %497 = vrot.lane.b32.xlu0 %v216, 21
        %v498 = vpop.permute.xlu0 %497
        %vm499 = vcmp.gt.f32.partialorder %v496, %v213
        %vm500 = vcmp.eq.f32.partialorder %v496, %v213
        %vm501 = vcmp.lt.s32.totalorder %v498, %v216
        %vm502 = vmand %vm500, %vm501
        %vm503 = vmor %vm499, %vm502
        %v504 = vsel %vm503, 1, 0
        %v505 = vadd.s32 %v491, %v504
        %506 = vrot.lane.b32.xlu0 %v504, 107
        %v507 = vpop.permute.xlu0 %506
        %v508 = vadd.s32 %v494, %v507
        %509 = vrot.lane.b32.xlu0 %v213, 22
        %v510 = vpop.permute.xlu0 %509
        %511 = vrot.lane.b32.xlu0 %v216, 22
        %v512 = vpop.permute.xlu0 %511
        %vm513 = vcmp.gt.f32.partialorder %v510, %v213
        %vm514 = vcmp.eq.f32.partialorder %v510, %v213
        %vm515 = vcmp.lt.s32.totalorder %v512, %v216
        %vm516 = vmand %vm514, %vm515
        %vm517 = vmor %vm513, %vm516
        %v518 = vsel %vm517, 1, 0
        %v519 = vadd.s32 %v505, %v518
        %520 = vrot.lane.b32.xlu0 %v518, 106
        %v521 = vpop.permute.xlu0 %520
        %v522 = vadd.s32 %v508, %v521
        %523 = vrot.lane.b32.xlu0 %v213, 23
        %v524 = vpop.permute.xlu0 %523
        %525 = vrot.lane.b32.xlu0 %v216, 23
        %v526 = vpop.permute.xlu0 %525
        %vm527 = vcmp.gt.f32.partialorder %v524, %v213
        %vm528 = vcmp.eq.f32.partialorder %v524, %v213
        %vm529 = vcmp.lt.s32.totalorder %v526, %v216
        %vm530 = vmand %vm528, %vm529
        %vm531 = vmor %vm527, %vm530
        %v532 = vsel %vm531, 1, 0
        %v533 = vadd.s32 %v519, %v532
        %534 = vrot.lane.b32.xlu0 %v532, 105
        %v535 = vpop.permute.xlu0 %534
        %v536 = vadd.s32 %v522, %v535
        %537 = vrot.lane.b32.xlu0 %v213, 24
        %v538 = vpop.permute.xlu0 %537
        %539 = vrot.lane.b32.xlu0 %v216, 24
        %v540 = vpop.permute.xlu0 %539
        %vm541 = vcmp.gt.f32.partialorder %v538, %v213
        %vm542 = vcmp.eq.f32.partialorder %v538, %v213
        %vm543 = vcmp.lt.s32.totalorder %v540, %v216
        %vm544 = vmand %vm542, %vm543
        %vm545 = vmor %vm541, %vm544
        %v546 = vsel %vm545, 1, 0
        %v547 = vadd.s32 %v533, %v546
        %548 = vrot.lane.b32.xlu0 %v546, 104
        %v549 = vpop.permute.xlu0 %548
        %v550 = vadd.s32 %v536, %v549
        %551 = vrot.lane.b32.xlu0 %v213, 25
        %v552 = vpop.permute.xlu0 %551
        %553 = vrot.lane.b32.xlu0 %v216, 25
        %v554 = vpop.permute.xlu0 %553
        %vm555 = vcmp.gt.f32.partialorder %v552, %v213
        %vm556 = vcmp.eq.f32.partialorder %v552, %v213
        %vm557 = vcmp.lt.s32.totalorder %v554, %v216
        %vm558 = vmand %vm556, %vm557
        %vm559 = vmor %vm555, %vm558
        %v560 = vsel %vm559, 1, 0
        %v561 = vadd.s32 %v547, %v560
        %562 = vrot.lane.b32.xlu0 %v560, 103
        %v563 = vpop.permute.xlu0 %562
        %v564 = vadd.s32 %v550, %v563
        %565 = vrot.lane.b32.xlu0 %v213, 26
        %v566 = vpop.permute.xlu0 %565
        %567 = vrot.lane.b32.xlu0 %v216, 26
        %v568 = vpop.permute.xlu0 %567
        %vm569 = vcmp.gt.f32.partialorder %v566, %v213
        %vm570 = vcmp.eq.f32.partialorder %v566, %v213
        %vm571 = vcmp.lt.s32.totalorder %v568, %v216
        %vm572 = vmand %vm570, %vm571
        %vm573 = vmor %vm569, %vm572
        %v574 = vsel %vm573, 1, 0
        %v575 = vadd.s32 %v561, %v574
        %576 = vrot.lane.b32.xlu0 %v574, 102
        %v577 = vpop.permute.xlu0 %576
        %v578 = vadd.s32 %v564, %v577
        %579 = vrot.lane.b32.xlu0 %v213, 27
        %v580 = vpop.permute.xlu0 %579
        %581 = vrot.lane.b32.xlu0 %v216, 27
        %v582 = vpop.permute.xlu0 %581
        %vm583 = vcmp.gt.f32.partialorder %v580, %v213
        %vm584 = vcmp.eq.f32.partialorder %v580, %v213
        %vm585 = vcmp.lt.s32.totalorder %v582, %v216
        %vm586 = vmand %vm584, %vm585
        %vm587 = vmor %vm583, %vm586
        %v588 = vsel %vm587, 1, 0
        %v589 = vadd.s32 %v575, %v588
        %590 = vrot.lane.b32.xlu0 %v588, 101
        %v591 = vpop.permute.xlu0 %590
        %v592 = vadd.s32 %v578, %v591
        %593 = vrot.lane.b32.xlu0 %v213, 28
        %v594 = vpop.permute.xlu0 %593
        %595 = vrot.lane.b32.xlu0 %v216, 28
        %v596 = vpop.permute.xlu0 %595
        %vm597 = vcmp.gt.f32.partialorder %v594, %v213
        %vm598 = vcmp.eq.f32.partialorder %v594, %v213
        %vm599 = vcmp.lt.s32.totalorder %v596, %v216
        %vm600 = vmand %vm598, %vm599
        %vm601 = vmor %vm597, %vm600
        %v602 = vsel %vm601, 1, 0
        %v603 = vadd.s32 %v589, %v602
        %604 = vrot.lane.b32.xlu0 %v602, 100
        %v605 = vpop.permute.xlu0 %604
        %v606 = vadd.s32 %v592, %v605
        %607 = vrot.lane.b32.xlu0 %v213, 29
        %v608 = vpop.permute.xlu0 %607
        %609 = vrot.lane.b32.xlu0 %v216, 29
        %v610 = vpop.permute.xlu0 %609
        %vm611 = vcmp.gt.f32.partialorder %v608, %v213
        %vm612 = vcmp.eq.f32.partialorder %v608, %v213
        %vm613 = vcmp.lt.s32.totalorder %v610, %v216
        %vm614 = vmand %vm612, %vm613
        %vm615 = vmor %vm611, %vm614
        %v616 = vsel %vm615, 1, 0
        %v617 = vadd.s32 %v603, %v616
        %618 = vrot.lane.b32.xlu0 %v616, 99
        %v619 = vpop.permute.xlu0 %618
        %v620 = vadd.s32 %v606, %v619
        %621 = vrot.lane.b32.xlu0 %v213, 30
        %v622 = vpop.permute.xlu0 %621
        %623 = vrot.lane.b32.xlu0 %v216, 30
        %v624 = vpop.permute.xlu0 %623
        %vm625 = vcmp.gt.f32.partialorder %v622, %v213
        %vm626 = vcmp.eq.f32.partialorder %v622, %v213
        %vm627 = vcmp.lt.s32.totalorder %v624, %v216
        %vm628 = vmand %vm626, %vm627
        %vm629 = vmor %vm625, %vm628
        %v630 = vsel %vm629, 1, 0
        %v631 = vadd.s32 %v617, %v630
        %632 = vrot.lane.b32.xlu0 %v630, 98
        %v633 = vpop.permute.xlu0 %632
        %v634 = vadd.s32 %v620, %v633
        %635 = vrot.lane.b32.xlu0 %v213, 31
        %v636 = vpop.permute.xlu0 %635
        %637 = vrot.lane.b32.xlu0 %v216, 31
        %v638 = vpop.permute.xlu0 %637
        %vm639 = vcmp.gt.f32.partialorder %v636, %v213
        %vm640 = vcmp.eq.f32.partialorder %v636, %v213
        %vm641 = vcmp.lt.s32.totalorder %v638, %v216
        %vm642 = vmand %vm640, %vm641
        %vm643 = vmor %vm639, %vm642
        %v644 = vsel %vm643, 1, 0
        %v645 = vadd.s32 %v631, %v644
        %646 = vrot.lane.b32.xlu0 %v644, 97
        %v647 = vpop.permute.xlu0 %646
        %v648 = vadd.s32 %v634, %v647
        %649 = vrot.lane.b32.xlu0 %v213, 32
        %v650 = vpop.permute.xlu0 %649
        %651 = vrot.lane.b32.xlu0 %v216, 32
        %v652 = vpop.permute.xlu0 %651
        %vm653 = vcmp.gt.f32.partialorder %v650, %v213
        %vm654 = vcmp.eq.f32.partialorder %v650, %v213
        %vm655 = vcmp.lt.s32.totalorder %v652, %v216
        %vm656 = vmand %vm654, %vm655
        %vm657 = vmor %vm653, %vm656
        %v658 = vsel %vm657, 1, 0
        %v659 = vadd.s32 %v645, %v658
        %660 = vrot.lane.b32.xlu0 %v658, 96
        %v661 = vpop.permute.xlu0 %660
        %v662 = vadd.s32 %v648, %v661
        %663 = vrot.lane.b32.xlu0 %v213, 33
        %v664 = vpop.permute.xlu0 %663
        %665 = vrot.lane.b32.xlu0 %v216, 33
        %v666 = vpop.permute.xlu0 %665
        %vm667 = vcmp.gt.f32.partialorder %v664, %v213
        %vm668 = vcmp.eq.f32.partialorder %v664, %v213
        %vm669 = vcmp.lt.s32.totalorder %v666, %v216
        %vm670 = vmand %vm668, %vm669
        %vm671 = vmor %vm667, %vm670
        %v672 = vsel %vm671, 1, 0
        %v673 = vadd.s32 %v659, %v672
        %674 = vrot.lane.b32.xlu0 %v672, 95
        %v675 = vpop.permute.xlu0 %674
        %v676 = vadd.s32 %v662, %v675
        %677 = vrot.lane.b32.xlu0 %v213, 34
        %v678 = vpop.permute.xlu0 %677
        %679 = vrot.lane.b32.xlu0 %v216, 34
        %v680 = vpop.permute.xlu0 %679
        %vm681 = vcmp.gt.f32.partialorder %v678, %v213
        %vm682 = vcmp.eq.f32.partialorder %v678, %v213
        %vm683 = vcmp.lt.s32.totalorder %v680, %v216
        %vm684 = vmand %vm682, %vm683
        %vm685 = vmor %vm681, %vm684
        %v686 = vsel %vm685, 1, 0
        %v687 = vadd.s32 %v673, %v686
        %688 = vrot.lane.b32.xlu0 %v686, 94
        %v689 = vpop.permute.xlu0 %688
        %v690 = vadd.s32 %v676, %v689
        %691 = vrot.lane.b32.xlu0 %v213, 35
        %v692 = vpop.permute.xlu0 %691
        %693 = vrot.lane.b32.xlu0 %v216, 35
        %v694 = vpop.permute.xlu0 %693
        %vm695 = vcmp.gt.f32.partialorder %v692, %v213
        %vm696 = vcmp.eq.f32.partialorder %v692, %v213
        %vm697 = vcmp.lt.s32.totalorder %v694, %v216
        %vm698 = vmand %vm696, %vm697
        %vm699 = vmor %vm695, %vm698
        %v700 = vsel %vm699, 1, 0
        %v701 = vadd.s32 %v687, %v700
        %702 = vrot.lane.b32.xlu0 %v700, 93
        %v703 = vpop.permute.xlu0 %702
        %v704 = vadd.s32 %v690, %v703
        %705 = vrot.lane.b32.xlu0 %v213, 36
        %v706 = vpop.permute.xlu0 %705
        %707 = vrot.lane.b32.xlu0 %v216, 36
        %v708 = vpop.permute.xlu0 %707
        %vm709 = vcmp.gt.f32.partialorder %v706, %v213
        %vm710 = vcmp.eq.f32.partialorder %v706, %v213
        %vm711 = vcmp.lt.s32.totalorder %v708, %v216
        %vm712 = vmand %vm710, %vm711
        %vm713 = vmor %vm709, %vm712
        %v714 = vsel %vm713, 1, 0
        %v715 = vadd.s32 %v701, %v714
        %716 = vrot.lane.b32.xlu0 %v714, 92
        %v717 = vpop.permute.xlu0 %716
        %v718 = vadd.s32 %v704, %v717
        %719 = vrot.lane.b32.xlu0 %v213, 37
        %v720 = vpop.permute.xlu0 %719
        %721 = vrot.lane.b32.xlu0 %v216, 37
        %v722 = vpop.permute.xlu0 %721
        %vm723 = vcmp.gt.f32.partialorder %v720, %v213
        %vm724 = vcmp.eq.f32.partialorder %v720, %v213
        %vm725 = vcmp.lt.s32.totalorder %v722, %v216
        %vm726 = vmand %vm724, %vm725
        %vm727 = vmor %vm723, %vm726
        %v728 = vsel %vm727, 1, 0
        %v729 = vadd.s32 %v715, %v728
        %730 = vrot.lane.b32.xlu0 %v728, 91
        %v731 = vpop.permute.xlu0 %730
        %v732 = vadd.s32 %v718, %v731
        %733 = vrot.lane.b32.xlu0 %v213, 38
        %v734 = vpop.permute.xlu0 %733
        %735 = vrot.lane.b32.xlu0 %v216, 38
        %v736 = vpop.permute.xlu0 %735
        %vm737 = vcmp.gt.f32.partialorder %v734, %v213
        %vm738 = vcmp.eq.f32.partialorder %v734, %v213
        %vm739 = vcmp.lt.s32.totalorder %v736, %v216
        %vm740 = vmand %vm738, %vm739
        %vm741 = vmor %vm737, %vm740
        %v742 = vsel %vm741, 1, 0
        %v743 = vadd.s32 %v729, %v742
        %744 = vrot.lane.b32.xlu0 %v742, 90
        %v745 = vpop.permute.xlu0 %744
        %v746 = vadd.s32 %v732, %v745
        %747 = vrot.lane.b32.xlu0 %v213, 39
        %v748 = vpop.permute.xlu0 %747
        %749 = vrot.lane.b32.xlu0 %v216, 39
        %v750 = vpop.permute.xlu0 %749
        %vm751 = vcmp.gt.f32.partialorder %v748, %v213
        %vm752 = vcmp.eq.f32.partialorder %v748, %v213
        %vm753 = vcmp.lt.s32.totalorder %v750, %v216
        %vm754 = vmand %vm752, %vm753
        %vm755 = vmor %vm751, %vm754
        %v756 = vsel %vm755, 1, 0
        %v757 = vadd.s32 %v743, %v756
        %758 = vrot.lane.b32.xlu0 %v756, 89
        %v759 = vpop.permute.xlu0 %758
        %v760 = vadd.s32 %v746, %v759
        %761 = vrot.lane.b32.xlu0 %v213, 40
        %v762 = vpop.permute.xlu0 %761
        %763 = vrot.lane.b32.xlu0 %v216, 40
        %v764 = vpop.permute.xlu0 %763
        %vm765 = vcmp.gt.f32.partialorder %v762, %v213
        %vm766 = vcmp.eq.f32.partialorder %v762, %v213
        %vm767 = vcmp.lt.s32.totalorder %v764, %v216
        %vm768 = vmand %vm766, %vm767
        %vm769 = vmor %vm765, %vm768
        %v770 = vsel %vm769, 1, 0
        %v771 = vadd.s32 %v757, %v770
        %772 = vrot.lane.b32.xlu0 %v770, 88
        %v773 = vpop.permute.xlu0 %772
        %v774 = vadd.s32 %v760, %v773
        %775 = vrot.lane.b32.xlu0 %v213, 41
        %v776 = vpop.permute.xlu0 %775
        %777 = vrot.lane.b32.xlu0 %v216, 41
        %v778 = vpop.permute.xlu0 %777
        %vm779 = vcmp.gt.f32.partialorder %v776, %v213
        %vm780 = vcmp.eq.f32.partialorder %v776, %v213
        %vm781 = vcmp.lt.s32.totalorder %v778, %v216
        %vm782 = vmand %vm780, %vm781
        %vm783 = vmor %vm779, %vm782
        %v784 = vsel %vm783, 1, 0
        %v785 = vadd.s32 %v771, %v784
        %786 = vrot.lane.b32.xlu0 %v784, 87
        %v787 = vpop.permute.xlu0 %786
        %v788 = vadd.s32 %v774, %v787
        %789 = vrot.lane.b32.xlu0 %v213, 42
        %v790 = vpop.permute.xlu0 %789
        %791 = vrot.lane.b32.xlu0 %v216, 42
        %v792 = vpop.permute.xlu0 %791
        %vm793 = vcmp.gt.f32.partialorder %v790, %v213
        %vm794 = vcmp.eq.f32.partialorder %v790, %v213
        %vm795 = vcmp.lt.s32.totalorder %v792, %v216
        %vm796 = vmand %vm794, %vm795
        %vm797 = vmor %vm793, %vm796
        %v798 = vsel %vm797, 1, 0
        %v799 = vadd.s32 %v785, %v798
        %800 = vrot.lane.b32.xlu0 %v798, 86
        %v801 = vpop.permute.xlu0 %800
        %v802 = vadd.s32 %v788, %v801
        %803 = vrot.lane.b32.xlu0 %v213, 43
        %v804 = vpop.permute.xlu0 %803
        %805 = vrot.lane.b32.xlu0 %v216, 43
        %v806 = vpop.permute.xlu0 %805
        %vm807 = vcmp.gt.f32.partialorder %v804, %v213
        %vm808 = vcmp.eq.f32.partialorder %v804, %v213
        %vm809 = vcmp.lt.s32.totalorder %v806, %v216
        %vm810 = vmand %vm808, %vm809
        %vm811 = vmor %vm807, %vm810
        %v812 = vsel %vm811, 1, 0
        %v813 = vadd.s32 %v799, %v812
        %814 = vrot.lane.b32.xlu0 %v812, 85
        %v815 = vpop.permute.xlu0 %814
        %v816 = vadd.s32 %v802, %v815
        %817 = vrot.lane.b32.xlu0 %v213, 44
        %v818 = vpop.permute.xlu0 %817
        %819 = vrot.lane.b32.xlu0 %v216, 44
        %v820 = vpop.permute.xlu0 %819
        %vm821 = vcmp.gt.f32.partialorder %v818, %v213
        %vm822 = vcmp.eq.f32.partialorder %v818, %v213
        %vm823 = vcmp.lt.s32.totalorder %v820, %v216
        %vm824 = vmand %vm822, %vm823
        %vm825 = vmor %vm821, %vm824
        %v826 = vsel %vm825, 1, 0
        %v827 = vadd.s32 %v813, %v826
        %828 = vrot.lane.b32.xlu0 %v826, 84
        %v829 = vpop.permute.xlu0 %828
        %v830 = vadd.s32 %v816, %v829
        %831 = vrot.lane.b32.xlu0 %v213, 45
        %v832 = vpop.permute.xlu0 %831
        %833 = vrot.lane.b32.xlu0 %v216, 45
        %v834 = vpop.permute.xlu0 %833
        %vm835 = vcmp.gt.f32.partialorder %v832, %v213
        %vm836 = vcmp.eq.f32.partialorder %v832, %v213
        %vm837 = vcmp.lt.s32.totalorder %v834, %v216
        %vm838 = vmand %vm836, %vm837
        %vm839 = vmor %vm835, %vm838
        %v840 = vsel %vm839, 1, 0
        %v841 = vadd.s32 %v827, %v840
        %842 = vrot.lane.b32.xlu0 %v840, 83
        %v843 = vpop.permute.xlu0 %842
        %v844 = vadd.s32 %v830, %v843
        %845 = vrot.lane.b32.xlu0 %v213, 46
        %v846 = vpop.permute.xlu0 %845
        %847 = vrot.lane.b32.xlu0 %v216, 46
        %v848 = vpop.permute.xlu0 %847
        %vm849 = vcmp.gt.f32.partialorder %v846, %v213
        %vm850 = vcmp.eq.f32.partialorder %v846, %v213
        %vm851 = vcmp.lt.s32.totalorder %v848, %v216
        %vm852 = vmand %vm850, %vm851
        %vm853 = vmor %vm849, %vm852
        %v854 = vsel %vm853, 1, 0
        %v855 = vadd.s32 %v841, %v854
        %856 = vrot.lane.b32.xlu0 %v854, 82
        %v857 = vpop.permute.xlu0 %856
        %v858 = vadd.s32 %v844, %v857
        %859 = vrot.lane.b32.xlu0 %v213, 47
        %v860 = vpop.permute.xlu0 %859
        %861 = vrot.lane.b32.xlu0 %v216, 47
        %v862 = vpop.permute.xlu0 %861
        %vm863 = vcmp.gt.f32.partialorder %v860, %v213
        %vm864 = vcmp.eq.f32.partialorder %v860, %v213
        %vm865 = vcmp.lt.s32.totalorder %v862, %v216
        %vm866 = vmand %vm864, %vm865
        %vm867 = vmor %vm863, %vm866
        %v868 = vsel %vm867, 1, 0
        %v869 = vadd.s32 %v855, %v868
        %870 = vrot.lane.b32.xlu0 %v868, 81
        %v871 = vpop.permute.xlu0 %870
        %v872 = vadd.s32 %v858, %v871
        %873 = vrot.lane.b32.xlu0 %v213, 48
        %v874 = vpop.permute.xlu0 %873
        %875 = vrot.lane.b32.xlu0 %v216, 48
        %v876 = vpop.permute.xlu0 %875
        %vm877 = vcmp.gt.f32.partialorder %v874, %v213
        %vm878 = vcmp.eq.f32.partialorder %v874, %v213
        %vm879 = vcmp.lt.s32.totalorder %v876, %v216
        %vm880 = vmand %vm878, %vm879
        %vm881 = vmor %vm877, %vm880
        %v882 = vsel %vm881, 1, 0
        %v883 = vadd.s32 %v869, %v882
        %884 = vrot.lane.b32.xlu0 %v882, 80
        %v885 = vpop.permute.xlu0 %884
        %v886 = vadd.s32 %v872, %v885
        %887 = vrot.lane.b32.xlu0 %v213, 49
        %v888 = vpop.permute.xlu0 %887
        %889 = vrot.lane.b32.xlu0 %v216, 49
        %v890 = vpop.permute.xlu0 %889
        %vm891 = vcmp.gt.f32.partialorder %v888, %v213
        %vm892 = vcmp.eq.f32.partialorder %v888, %v213
        %vm893 = vcmp.lt.s32.totalorder %v890, %v216
        %vm894 = vmand %vm892, %vm893
        %vm895 = vmor %vm891, %vm894
        %v896 = vsel %vm895, 1, 0
        %v897 = vadd.s32 %v883, %v896
        %898 = vrot.lane.b32.xlu0 %v896, 79
        %v899 = vpop.permute.xlu0 %898
        %v900 = vadd.s32 %v886, %v899
        %901 = vrot.lane.b32.xlu0 %v213, 50
        %v902 = vpop.permute.xlu0 %901
        %903 = vrot.lane.b32.xlu0 %v216, 50
        %v904 = vpop.permute.xlu0 %903
        %vm905 = vcmp.gt.f32.partialorder %v902, %v213
        %vm906 = vcmp.eq.f32.partialorder %v902, %v213
        %vm907 = vcmp.lt.s32.totalorder %v904, %v216
        %vm908 = vmand %vm906, %vm907
        %vm909 = vmor %vm905, %vm908
        %v910 = vsel %vm909, 1, 0
        %v911 = vadd.s32 %v897, %v910
        %912 = vrot.lane.b32.xlu0 %v910, 78
        %v913 = vpop.permute.xlu0 %912
        %v914 = vadd.s32 %v900, %v913
        %915 = vrot.lane.b32.xlu0 %v213, 51
        %v916 = vpop.permute.xlu0 %915
        %917 = vrot.lane.b32.xlu0 %v216, 51
        %v918 = vpop.permute.xlu0 %917
        %vm919 = vcmp.gt.f32.partialorder %v916, %v213
        %vm920 = vcmp.eq.f32.partialorder %v916, %v213
        %vm921 = vcmp.lt.s32.totalorder %v918, %v216
        %vm922 = vmand %vm920, %vm921
        %vm923 = vmor %vm919, %vm922
        %v924 = vsel %vm923, 1, 0
        %v925 = vadd.s32 %v911, %v924
        %926 = vrot.lane.b32.xlu0 %v924, 77
        %v927 = vpop.permute.xlu0 %926
        %v928 = vadd.s32 %v914, %v927
        %929 = vrot.lane.b32.xlu0 %v213, 52
        %v930 = vpop.permute.xlu0 %929
        %931 = vrot.lane.b32.xlu0 %v216, 52
        %v932 = vpop.permute.xlu0 %931
        %vm933 = vcmp.gt.f32.partialorder %v930, %v213
        %vm934 = vcmp.eq.f32.partialorder %v930, %v213
        %vm935 = vcmp.lt.s32.totalorder %v932, %v216
        %vm936 = vmand %vm934, %vm935
        %vm937 = vmor %vm933, %vm936
        %v938 = vsel %vm937, 1, 0
        %v939 = vadd.s32 %v925, %v938
        %940 = vrot.lane.b32.xlu0 %v938, 76
        %v941 = vpop.permute.xlu0 %940
        %v942 = vadd.s32 %v928, %v941
        %943 = vrot.lane.b32.xlu0 %v213, 53
        %v944 = vpop.permute.xlu0 %943
        %945 = vrot.lane.b32.xlu0 %v216, 53
        %v946 = vpop.permute.xlu0 %945
        %vm947 = vcmp.gt.f32.partialorder %v944, %v213
        %vm948 = vcmp.eq.f32.partialorder %v944, %v213
        %vm949 = vcmp.lt.s32.totalorder %v946, %v216
        %vm950 = vmand %vm948, %vm949
        %vm951 = vmor %vm947, %vm950
        %v952 = vsel %vm951, 1, 0
        %v953 = vadd.s32 %v939, %v952
        %954 = vrot.lane.b32.xlu0 %v952, 75
        %v955 = vpop.permute.xlu0 %954
        %v956 = vadd.s32 %v942, %v955
        %957 = vrot.lane.b32.xlu0 %v213, 54
        %v958 = vpop.permute.xlu0 %957
        %959 = vrot.lane.b32.xlu0 %v216, 54
        %v960 = vpop.permute.xlu0 %959
        %vm961 = vcmp.gt.f32.partialorder %v958, %v213
        %vm962 = vcmp.eq.f32.partialorder %v958, %v213
        %vm963 = vcmp.lt.s32.totalorder %v960, %v216
        %vm964 = vmand %vm962, %vm963
        %vm965 = vmor %vm961, %vm964
        %v966 = vsel %vm965, 1, 0
        %v967 = vadd.s32 %v953, %v966
        %968 = vrot.lane.b32.xlu0 %v966, 74
        %v969 = vpop.permute.xlu0 %968
        %v970 = vadd.s32 %v956, %v969
        %971 = vrot.lane.b32.xlu0 %v213, 55
        %v972 = vpop.permute.xlu0 %971
        %973 = vrot.lane.b32.xlu0 %v216, 55
        %v974 = vpop.permute.xlu0 %973
        %vm975 = vcmp.gt.f32.partialorder %v972, %v213
        %vm976 = vcmp.eq.f32.partialorder %v972, %v213
        %vm977 = vcmp.lt.s32.totalorder %v974, %v216
        %vm978 = vmand %vm976, %vm977
        %vm979 = vmor %vm975, %vm978
        %v980 = vsel %vm979, 1, 0
        %v981 = vadd.s32 %v967, %v980
        %982 = vrot.lane.b32.xlu0 %v980, 73
        %v983 = vpop.permute.xlu0 %982
        %v984 = vadd.s32 %v970, %v983
        %985 = vrot.lane.b32.xlu0 %v213, 56
        %v986 = vpop.permute.xlu0 %985
        %987 = vrot.lane.b32.xlu0 %v216, 56
        %v988 = vpop.permute.xlu0 %987
        %vm989 = vcmp.gt.f32.partialorder %v986, %v213
        %vm990 = vcmp.eq.f32.partialorder %v986, %v213
        %vm991 = vcmp.lt.s32.totalorder %v988, %v216
        %vm992 = vmand %vm990, %vm991
        %vm993 = vmor %vm989, %vm992
        %v994 = vsel %vm993, 1, 0
        %v995 = vadd.s32 %v981, %v994
        %996 = vrot.lane.b32.xlu0 %v994, 72
        %v997 = vpop.permute.xlu0 %996
        %v998 = vadd.s32 %v984, %v997
        %999 = vrot.lane.b32.xlu0 %v213, 57
        %v1000 = vpop.permute.xlu0 %999
        %1001 = vrot.lane.b32.xlu0 %v216, 57
        %v1002 = vpop.permute.xlu0 %1001
        %vm1003 = vcmp.gt.f32.partialorder %v1000, %v213
        %vm1004 = vcmp.eq.f32.partialorder %v1000, %v213
        %vm1005 = vcmp.lt.s32.totalorder %v1002, %v216
        %vm1006 = vmand %vm1004, %vm1005
        %vm1007 = vmor %vm1003, %vm1006
        %v1008 = vsel %vm1007, 1, 0
        %v1009 = vadd.s32 %v995, %v1008
        %1010 = vrot.lane.b32.xlu0 %v1008, 71
        %v1011 = vpop.permute.xlu0 %1010
        %v1012 = vadd.s32 %v998, %v1011
        %1013 = vrot.lane.b32.xlu0 %v213, 58
        %v1014 = vpop.permute.xlu0 %1013
        %1015 = vrot.lane.b32.xlu0 %v216, 58
        %v1016 = vpop.permute.xlu0 %1015
        %vm1017 = vcmp.gt.f32.partialorder %v1014, %v213
        %vm1018 = vcmp.eq.f32.partialorder %v1014, %v213
        %vm1019 = vcmp.lt.s32.totalorder %v1016, %v216
        %vm1020 = vmand %vm1018, %vm1019
        %vm1021 = vmor %vm1017, %vm1020
        %v1022 = vsel %vm1021, 1, 0
        %v1023 = vadd.s32 %v1009, %v1022
        %1024 = vrot.lane.b32.xlu0 %v1022, 70
        %v1025 = vpop.permute.xlu0 %1024
        %v1026 = vadd.s32 %v1012, %v1025
        %1027 = vrot.lane.b32.xlu0 %v213, 59
        %v1028 = vpop.permute.xlu0 %1027
        %1029 = vrot.lane.b32.xlu0 %v216, 59
        %v1030 = vpop.permute.xlu0 %1029
        %vm1031 = vcmp.gt.f32.partialorder %v1028, %v213
        %vm1032 = vcmp.eq.f32.partialorder %v1028, %v213
        %vm1033 = vcmp.lt.s32.totalorder %v1030, %v216
        %vm1034 = vmand %vm1032, %vm1033
        %vm1035 = vmor %vm1031, %vm1034
        %v1036 = vsel %vm1035, 1, 0
        %v1037 = vadd.s32 %v1023, %v1036
        %1038 = vrot.lane.b32.xlu0 %v1036, 69
        %v1039 = vpop.permute.xlu0 %1038
        %v1040 = vadd.s32 %v1026, %v1039
        %1041 = vrot.lane.b32.xlu0 %v213, 60
        %v1042 = vpop.permute.xlu0 %1041
        %1043 = vrot.lane.b32.xlu0 %v216, 60
        %v1044 = vpop.permute.xlu0 %1043
        %vm1045 = vcmp.gt.f32.partialorder %v1042, %v213
        %vm1046 = vcmp.eq.f32.partialorder %v1042, %v213
        %vm1047 = vcmp.lt.s32.totalorder %v1044, %v216
        %vm1048 = vmand %vm1046, %vm1047
        %vm1049 = vmor %vm1045, %vm1048
        %v1050 = vsel %vm1049, 1, 0
        %v1051 = vadd.s32 %v1037, %v1050
        %1052 = vrot.lane.b32.xlu0 %v1050, 68
        %v1053 = vpop.permute.xlu0 %1052
        %v1054 = vadd.s32 %v1040, %v1053
        %1055 = vrot.lane.b32.xlu0 %v213, 61
        %v1056 = vpop.permute.xlu0 %1055
        %1057 = vrot.lane.b32.xlu0 %v216, 61
        %v1058 = vpop.permute.xlu0 %1057
        %vm1059 = vcmp.gt.f32.partialorder %v1056, %v213
        %vm1060 = vcmp.eq.f32.partialorder %v1056, %v213
        %vm1061 = vcmp.lt.s32.totalorder %v1058, %v216
        %vm1062 = vmand %vm1060, %vm1061
        %vm1063 = vmor %vm1059, %vm1062
        %v1064 = vsel %vm1063, 1, 0
        %v1065 = vadd.s32 %v1051, %v1064
        %1066 = vrot.lane.b32.xlu0 %v1064, 67
        %v1067 = vpop.permute.xlu0 %1066
        %v1068 = vadd.s32 %v1054, %v1067
        %1069 = vrot.lane.b32.xlu0 %v213, 62
        %v1070 = vpop.permute.xlu0 %1069
        %1071 = vrot.lane.b32.xlu0 %v216, 62
        %v1072 = vpop.permute.xlu0 %1071
        %vm1073 = vcmp.gt.f32.partialorder %v1070, %v213
        %vm1074 = vcmp.eq.f32.partialorder %v1070, %v213
        %vm1075 = vcmp.lt.s32.totalorder %v1072, %v216
        %vm1076 = vmand %vm1074, %vm1075
        %vm1077 = vmor %vm1073, %vm1076
        %v1078 = vsel %vm1077, 1, 0
        %v1079 = vadd.s32 %v1065, %v1078
        %1080 = vrot.lane.b32.xlu0 %v1078, 66
        %v1081 = vpop.permute.xlu0 %1080
        %v1082 = vadd.s32 %v1068, %v1081
        %1083 = vrot.lane.b32.xlu0 %v213, 63
        %v1084 = vpop.permute.xlu0 %1083
        %1085 = vrot.lane.b32.xlu0 %v216, 63
        %v1086 = vpop.permute.xlu0 %1085
        %vm1087 = vcmp.gt.f32.partialorder %v1084, %v213
        %vm1088 = vcmp.eq.f32.partialorder %v1084, %v213
        %vm1089 = vcmp.lt.s32.totalorder %v1086, %v216
        %vm1090 = vmand %vm1088, %vm1089
        %vm1091 = vmor %vm1087, %vm1090
        %v1092 = vsel %vm1091, 1, 0
        %v1093 = vadd.s32 %v1079, %v1092
        %1094 = vrot.lane.b32.xlu0 %v1092, 65
        %v1095 = vpop.permute.xlu0 %1094
        %v1096 = vadd.s32 %v1082, %v1095
        %1097 = vrot.lane.b32.xlu0 %v213, 64
        %v1098 = vpop.permute.xlu0 %1097
        %1099 = vrot.lane.b32.xlu0 %v216, 64
        %v1100 = vpop.permute.xlu0 %1099
        %vm1101 = vcmp.gt.f32.partialorder %v1098, %v213
        %vm1102 = vcmp.eq.f32.partialorder %v1098, %v213
        %vm1103 = vcmp.lt.s32.totalorder %v1100, %v216
        %vm1104 = vmand %vm1102, %vm1103
        %vm1105 = vmor %vm1101, %vm1104
        %v1106 = vsel %vm1105, 1, 0
        %v1107 = vadd.s32 %v1093, %v1106
        %v1108 = vsub.s32 %v1107, %v1096
        %vm1109 = vcmp.lt.s32.totalorder %v1108, 4294967265
        %v1110 = vsel %vm1109, 1, 0
        %v1111 = vcvt.s32.f32 %v1110
        %1112 = vst [vmem:[%s177] sm:$0xff] %v1111
        %s1113 = sand.u32 %s75, 1
        %s1114 = scalar_lea.sflag [#allocation4], %s1113
        %s1115 = sand.u32 %s75, 1
        %s1116 = smul.addr %s1115, 8
        %s1117 = scalar_lea.vmem [#allocation7], %s1116
        // Predicated region
        $region37: #{tpu_custom_call.1} parent=27 // pred_check
          %p1118 = pneg %p85
        $region38: #{tpu_custom_call.1} parent=27 // pred_check_branch
          %1120 = sbr.rel (%p1118) target = $region40
        $region39: #{tpu_custom_call.1} parent=27 // pred_region
          %1122 = vsyncadd %s1114, 0
          %s1123 = smul.addr %s20, 8
          %s1124 = scalar_lea.hbm %s2, %s1123
          %s1126 = sshll.u32 %s1117, 4
          %s1127 = int_to_ptr.vmem [resolvable:$true] %s1126
          %s1128 = sshll.u32 %s1124, 4
          %s1129 = int_to_ptr.hbm [resolvable:$true] %s1128
          %1131 = dma.vmem_to_hbm [thread:$0]  %s1127, 128, %s1129, %s1114
        $region40: #{tpu_custom_call.1} parent=27 // pred_fallthru
          _
      $region28: #{tpu_custom_call.1} parent=5 // pred_fallthru
        _
      %p1132 = scmp.le.s32.totalorder 2, %s15
      // Predicated region
      $region41: #{tpu_custom_call.1} parent=5 // pred_check
        %p1133 = pneg %p1132
      $region42: #{tpu_custom_call.1} parent=5 // pred_check_branch
        %1135 = sbr.rel (%p1133) target = $region44
      $region43: #{tpu_custom_call.1} parent=5 // pred_region
        %s1136 = ssub.s32 %s15, 2
        // Predicated region
        $region45: #{tpu_custom_call.1} parent=43 // pred_check
          %p1137 = pneg %p91
        $region46: #{tpu_custom_call.1} parent=43 // pred_check_branch
          %1139 = sbr.rel (%p1137) target = $region48
        $region47: #{tpu_custom_call.1} parent=43 // pred_region
          %s1140 = sand.u32 %s76, 1
          %s1141 = scalar_lea.sflag [#allocation4], %s1140
          %s1142 = sand.u32 %s76, 1
          %s1143 = smul.addr %s1142, 8
          %s1144 = scalar_lea.vmem [#allocation7], %s1143
          %1146 = dma.done %s1141, 128
        $region48: #{tpu_custom_call.1} parent=43 // pred_fallthru
          _
      $region44: #{tpu_custom_call.1} parent=5 // pred_fallthru
        _
    $region6: #{tpu_custom_call.1} parent=1 // loop_footer
      %s19 = sadd.s32 1, %s15
    $region7: #{tpu_custom_call.1} parent=1 // loop_footer_branch
      %14 = sbr.rel target = $region3
    $region8: #{tpu_custom_call.1} parent=1 // loop_exit
      _
    %1147 = vsyncpa [#allocation3], 1
    %s1148 = scalar_lea.sflag [#allocation3], 1
    %1149 = vsyncpa %s1148, 1
    %1150 = vsyncpa [#allocation6], 1
    %1151 = vsyncpa [#allocation4], 1
    %s1152 = scalar_lea.sflag [#allocation4], 1
    %1153 = vsyncpa %s1152, 1

</llo_original>
